<compile_context>
chip_gen: v6e
topology: v6e:2x2x1
jax: 0.10.0
libtpu: 0.0.40
codegen_flags: <defaults>
</compile_context>

<pallas_src>
import functools

import jax
import jax.numpy as jnp
from jax.experimental import pallas as pl
from jax.experimental.pallas import tpu as pltpu


D_IN, D_H1, D_H2, D_H3, D_OUT = 9, 20, 30, 10, 2


def _cdiv(a, b):
    return (a + b - 1) // b


def _round_up(a, b):
    return _cdiv(a, b) * b


def _mlp2_kernel(x_ref,
                 w1_ref, b1_ref,
                 w2_ref, b2_ref,
                 w3_ref, b3_ref,
                 w4_ref, b4_ref,
                 o_ref, *, use_bf16):
    """Fused forward.  x_ref: [block_b, 9] batch-major; o_ref: [2, block_b].

    Weights are PyTorch-convention [out, in]; biases [out, 1] broadcast across
    the 128-lane (batch) axis.  Activations are feature-major [feat, block_b].
    """
    dot_dtype = jnp.bfloat16 if use_bf16 else jnp.float32
    precision = None if use_bf16 else jax.lax.Precision.HIGHEST

    x = x_ref[...].astype(dot_dtype)                         # [Bb, 9]

    # Layer 1 doubles as the layout change: contract both operands on their
    # last ("in") dim -> feature-major [20, Bb] with batch on the lanes.
    h = jax.lax.dot_general(
        w1_ref[...].astype(dot_dtype), x,
        dimension_numbers=(((1,), (1,)), ((), ())),
        preferred_element_type=jnp.float32, precision=precision)
    h = jnp.maximum(h + b1_ref[...], 0.0)                    # [20, Bb]

    h = jnp.dot(w2_ref[...].astype(dot_dtype), h.astype(dot_dtype),
                preferred_element_type=jnp.float32, precision=precision)
    h = jnp.maximum(h + b2_ref[...], 0.0)                    # [30, Bb]

    h = jnp.dot(w3_ref[...].astype(dot_dtype), h.astype(dot_dtype),
                preferred_element_type=jnp.float32, precision=precision)
    h = jnp.maximum(h + b3_ref[...], 0.0)                    # [10, Bb]

    # NOTE: if a bundle dump shows the MXU-push slot binding, this last (and
    # possibly the first) tiny layer could move to VPU broadcast mul/adds.
    z = jnp.dot(w4_ref[...].astype(dot_dtype), h.astype(dot_dtype),
                preferred_element_type=jnp.float32, precision=precision)
    z = z + b4_ref[...]                                      # [2, Bb]

    o_ref[...] = z.astype(o_ref.dtype)


@functools.partial(jax.jit,
                   static_argnames=("block_b", "use_bf16", "feature_major_out"))
def mlp2_forward(x, params, *, block_b=8192, use_bf16=False,
                 feature_major_out=False):
    """Fused MLP2 forward.

    x: [B, 9] float32, batch-major (any B; no padding copy is made).
    params: w1..w4 as [out, in], b1..b4 as [out, 1].
    Returns [B, 2] float32 (or [2, B] if feature_major_out=True).
    """
    B, din = x.shape
    assert din == D_IN
    assert block_b % 128 == 0 and block_b >= 128, \
        "block_b must be a positive multiple of the 128-lane width"

    # Don't tile past the batch; and keep >= 2 blocks for v7x's two TCs.
    block_b = min(block_b, _round_up(B, 128))
    if B >= 256:
        block_b = min(block_b, _round_up(_cdiv(B, 2), 128))
    block_b = max(block_b, 128)

    n_blocks = pl.cdiv(B, block_b)

    w1, b1 = params["w1"], params["b1"]
    w2, b2 = params["w2"], params["b2"]
    w3, b3 = params["w3"], params["b3"]
    w4, b4 = params["w4"], params["b4"]

    # Weights/biases are tiny and use constant index_maps -> stay resident in
    # VMEM across the whole grid (no re-DMA per step).
    def const2(shape):
        return pl.BlockSpec(shape, lambda i: (0, 0))

    in_specs = [
        pl.BlockSpec((block_b, D_IN), lambda i: (i, 0)),   # batch-major x tile
        const2(w1.shape), const2(b1.shape),
        const2(w2.shape), const2(b2.shape),
        const2(w3.shape), const2(b3.shape),
        const2(w4.shape), const2(b4.shape),
    ]
    out_spec = pl.BlockSpec((D_OUT, block_b), lambda i: (0, i))

    # Per-step VMEM footprint (lane/sublane padded), x/out double-buffered.
    vmem_est = (2 * block_b * 128 * 4            # x tile: 9 -> 128 lanes
                + 2 * 8 * block_b * 4            # out tile: 2 -> 8 sublanes
                + (24 + 32 + 16) * block_b * 4   # h1/h2/h3 temporaries
                + (1 << 20))                     # weights/biases + slack
    # Raise v5e's 16 MiB scoped default when needed; stay under v7x's 64 MiB
    # physical VMEM.  (block_b > ~16384 needs care on v5e/v7x.)
    vmem_limit = int(min(max(2 * vmem_est, 24 << 20), 48 << 20))

    n_weight_params = (D_IN * D_H1 + D_H1 + D_H1 * D_H2 + D_H2 +
                       D_H2 * D_H3 + D_H3 + D_H3 * D_OUT + D_OUT)
    flops = 2 * (D_IN * D_H1 + D_H1 * D_H2 + D_H2 * D_H3 + D_H3 * D_OUT) * B
    bytes_accessed = 4 * B * (D_IN + D_OUT) + 4 * n_weight_params

    out_fm = pl.pallas_call(
        functools.partial(_mlp2_kernel, use_bf16=use_bf16),
        out_shape=jax.ShapeDtypeStruct((D_OUT, B), jnp.float32),
        grid_spec=pltpu.PrefetchScalarGridSpec(
            num_scalar_prefetch=0,
            grid=(n_blocks,),
            in_specs=in_specs,
            out_specs=out_spec,
        ),
        compiler_params=pltpu.CompilerParams(
            dimension_semantics=("parallel",),       # shards across TCs on v7x
            vmem_limit_bytes=vmem_limit,
        ),
        cost_estimate=pl.CostEstimate(
            flops=flops, transcendentals=0, bytes_accessed=bytes_accessed),
    )(x, w1, b1, w2, b2, w3, b3, w4, b4)

    if feature_major_out:
        return out_fm                      # [2, B], lane-dense, no extra pass
    return out_fm.T                        # PyTorch layout [B, 2] (tiny copy)


def init_mlp2_params(key):
    """nn.Linear-style init: U(-1/sqrt(fan_in), 1/sqrt(fan_in)).

    Weights stored as [out, in] (PyTorch convention), biases as [out, 1].
    """
    dims = [(D_IN, D_H1), (D_H1, D_H2), (D_H2, D_H3), (D_H3, D_OUT)]
    params = {}
    keys = jax.random.split(key, 2 * len(dims))
    for idx, (fan_in, fan_out) in enumerate(dims):
        bound = 1.0 / float(fan_in) ** 0.5
        wk, bk = keys[2 * idx], keys[2 * idx + 1]
        params[f"w{idx + 1}"] = jax.random.uniform(
            wk, (fan_out, fan_in), jnp.float32, -bound, bound)
        params[f"b{idx + 1}"] = jax.random.uniform(
            bk, (fan_out, 1), jnp.float32, -bound, bound)
    return params


def mlp2_reference(x, params):
    """Pure-JAX batch-major reference (f32, HIGHEST precision)."""
    dot = functools.partial(jnp.dot, precision=jax.lax.Precision.HIGHEST)
    h = jnp.maximum(dot(x, params["w1"].T) + params["b1"].T, 0.0)
    h = jnp.maximum(dot(h, params["w2"].T) + params["b2"].T, 0.0)
    h = jnp.maximum(dot(h, params["w3"].T) + params["b3"].T, 0.0)
    return dot(h, params["w4"].T) + params["b4"].T


if __name__ == "__main__":
    key = jax.random.PRNGKey(0)
    pkey, xkey1, xkey2 = jax.random.split(key, 3)
    params = init_mlp2_params(pkey)

    # Small ragged batch: single partially-filled (masked) tile.
    x_small = jax.random.normal(xkey1, (8, D_IN), dtype=jnp.float32)
    z_small = jax.block_until_ready(mlp2_forward(x_small, params))
    ref_small = mlp2_reference(x_small, params)
    assert z_small.shape == (8, D_OUT)
    assert jnp.allclose(z_small, ref_small, atol=1e-5, rtol=1e-5), \
        "small-batch mismatch vs reference"

    # Larger ragged batch: multi-block grid with a masked last tile.
    x_big = jax.random.normal(xkey2, (300, D_IN), dtype=jnp.float32)
    z_big = jax.block_until_ready(mlp2_forward(x_big, params, block_b=128))
    ref_big = mlp2_reference(x_big, params)
    assert z_big.shape == (300, D_OUT)
    assert jnp.allclose(z_big, ref_big, atol=1e-5, rtol=1e-5), \
        "multi-block mismatch vs reference"

    print("KERNEL_OK")
</pallas_src>

<mosaic_0001>
module attributes {stable_mosaic.version = 11 : i64} {
  func.func @_mlp2_kernel(%arg0: i32, %arg1: memref<128x9xf32, #tpu.memory_space<vmem>>, %arg2: memref<20x9xf32, #tpu.memory_space<vmem>>, %arg3: memref<20x1xf32, #tpu.memory_space<vmem>>, %arg4: memref<30x20xf32, #tpu.memory_space<vmem>>, %arg5: memref<30x1xf32, #tpu.memory_space<vmem>>, %arg6: memref<10x30xf32, #tpu.memory_space<vmem>>, %arg7: memref<10x1xf32, #tpu.memory_space<vmem>>, %arg8: memref<2x10xf32, #tpu.memory_space<vmem>>, %arg9: memref<2x1xf32, #tpu.memory_space<vmem>>, %arg10: memref<2x128xf32, #tpu.memory_space<vmem>>) attributes {dimension_semantics = [#tpu.dimension_semantics<parallel>], iteration_bounds = array<i64: 1>, scalar_prefetch = 0 : i64, scratch_operands = 0 : i64, tpu.core_type = #tpu.core_type<tc>, window_params = [{transform_indices = @transform_0, window_bounds = array<i64: 128, 9>}, {pipeline_mode = #tpu.pipeline_mode<synchronous>, transform_indices = @transform_1, window_bounds = array<i64: 20, 9>}, {pipeline_mode = #tpu.pipeline_mode<synchronous>, transform_indices = @transform_2, window_bounds = array<i64: 20, 1>}, {pipeline_mode = #tpu.pipeline_mode<synchronous>, transform_indices = @transform_3, window_bounds = array<i64: 30, 20>}, {pipeline_mode = #tpu.pipeline_mode<synchronous>, transform_indices = @transform_4, window_bounds = array<i64: 30, 1>}, {pipeline_mode = #tpu.pipeline_mode<synchronous>, transform_indices = @transform_5, window_bounds = array<i64: 10, 30>}, {pipeline_mode = #tpu.pipeline_mode<synchronous>, transform_indices = @transform_6, window_bounds = array<i64: 10, 1>}, {pipeline_mode = #tpu.pipeline_mode<synchronous>, transform_indices = @transform_7, window_bounds = array<i64: 2, 10>}, {pipeline_mode = #tpu.pipeline_mode<synchronous>, transform_indices = @transform_8, window_bounds = array<i64: 2, 1>}, {transform_indices = @transform_9, window_bounds = array<i64: 2, 128>}]} {
    %c0 = arith.constant 0 : index
    %c0_0 = arith.constant 0 : index
    %0 = vector.load %arg1[%c0, %c0_0] : memref<128x9xf32, #tpu.memory_space<vmem>>, vector<128x9xf32>
    %c0_1 = arith.constant 0 : index
    %c0_2 = arith.constant 0 : index
    %1 = vector.load %arg2[%c0_1, %c0_2] : memref<20x9xf32, #tpu.memory_space<vmem>>, vector<20x9xf32>
    %cst = arith.constant dense<0.000000e+00> : vector<20x128xf32>
    %2 = tpu.matmul %1, %0, %cst {dimension_numbers = #tpu.dot_dimension_numbers<[1], [1], [0], [0], [0, 0, 1, 0], [], []>, precision = #tpu.contract_precision<fp32>} : vector<20x9xf32>, vector<128x9xf32>, vector<20x128xf32> -> vector<20x128xf32>
    %c0_3 = arith.constant 0 : index
    %c0_4 = arith.constant 0 : index
    %3 = vector.load %arg3[%c0_3, %c0_4] : memref<20x1xf32, #tpu.memory_space<vmem>>, vector<20x1xf32>
    %4 = vector.broadcast %3 : vector<20x1xf32> to vector<20x128xf32>
    %5 = arith.addf %2, %4 : vector<20x128xf32>
    %cst_5 = arith.constant 0.000000e+00 : f32
    %6 = vector.broadcast %cst_5 : f32 to vector<20x128xf32>
    %7 = arith.maximumf %5, %6 : vector<20x128xf32>
    %c0_6 = arith.constant 0 : index
    %c0_7 = arith.constant 0 : index
    %8 = vector.load %arg4[%c0_6, %c0_7] : memref<30x20xf32, #tpu.memory_space<vmem>>, vector<30x20xf32>
    %cst_8 = arith.constant dense<0.000000e+00> : vector<30x128xf32>
    %9 = tpu.matmul %8, %7, %cst_8 {dimension_numbers = #tpu.dot_dimension_numbers<[1], [0], [0], [1], [0, 0, 1, 1], [], []>, precision = #tpu.contract_precision<fp32>} : vector<30x20xf32>, vector<20x128xf32>, vector<30x128xf32> -> vector<30x128xf32>
    %c0_9 = arith.constant 0 : index
    %c0_10 = arith.constant 0 : index
    %10 = vector.load %arg5[%c0_9, %c0_10] : memref<30x1xf32, #tpu.memory_space<vmem>>, vector<30x1xf32>
    %11 = vector.broadcast %10 : vector<30x1xf32> to vector<30x128xf32>
    %12 = arith.addf %9, %11 : vector<30x128xf32>
    %cst_11 = arith.constant 0.000000e+00 : f32
    %13 = vector.broadcast %cst_11 : f32 to vector<30x128xf32>
    %14 = arith.maximumf %12, %13 : vector<30x128xf32>
    %c0_12 = arith.constant 0 : index
    %c0_13 = arith.constant 0 : index
    %15 = vector.load %arg6[%c0_12, %c0_13] : memref<10x30xf32, #tpu.memory_space<vmem>>, vector<10x30xf32>
    %cst_14 = arith.constant dense<0.000000e+00> : vector<10x128xf32>
    %16 = tpu.matmul %15, %14, %cst_14 {dimension_numbers = #tpu.dot_dimension_numbers<[1], [0], [0], [1], [0, 0, 1, 1], [], []>, precision = #tpu.contract_precision<fp32>} : vector<10x30xf32>, vector<30x128xf32>, vector<10x128xf32> -> vector<10x128xf32>
    %c0_15 = arith.constant 0 : index
    %c0_16 = arith.constant 0 : index
    %17 = vector.load %arg7[%c0_15, %c0_16] : memref<10x1xf32, #tpu.memory_space<vmem>>, vector<10x1xf32>
    %18 = vector.broadcast %17 : vector<10x1xf32> to vector<10x128xf32>
    %19 = arith.addf %16, %18 : vector<10x128xf32>
    %cst_17 = arith.constant 0.000000e+00 : f32
    %20 = vector.broadcast %cst_17 : f32 to vector<10x128xf32>
    %21 = arith.maximumf %19, %20 : vector<10x128xf32>
    %c0_18 = arith.constant 0 : index
    %c0_19 = arith.constant 0 : index
    %22 = vector.load %arg8[%c0_18, %c0_19] : memref<2x10xf32, #tpu.memory_space<vmem>>, vector<2x10xf32>
    %cst_20 = arith.constant dense<0.000000e+00> : vector<2x128xf32>
    %23 = tpu.matmul %22, %21, %cst_20 {dimension_numbers = #tpu.dot_dimension_numbers<[1], [0], [0], [1], [0, 0, 1, 1], [], []>, precision = #tpu.contract_precision<fp32>} : vector<2x10xf32>, vector<10x128xf32>, vector<2x128xf32> -> vector<2x128xf32>
    %c0_21 = arith.constant 0 : index
    %c0_22 = arith.constant 0 : index
    %24 = vector.load %arg9[%c0_21, %c0_22] : memref<2x1xf32, #tpu.memory_space<vmem>>, vector<2x1xf32>
    %25 = vector.broadcast %24 : vector<2x1xf32> to vector<2x128xf32>
    %26 = arith.addf %23, %25 : vector<2x128xf32>
    %c0_23 = arith.constant 0 : index
    %c0_24 = arith.constant 0 : index
    %27 = vector.load %arg10[%c0_23, %c0_24] : memref<2x128xf32, #tpu.memory_space<vmem>>, vector<2x128xf32>
    tpu.vector_store %arg10[%c0_23, %c0_24], %26 {strides = array<i32>} : memref<2x128xf32, #tpu.memory_space<vmem>>, vector<2x128xf32>,
    return
  }
  func.func @transform_0(%arg0: i32) -> (i32, i32) {
    %c0_i32 = arith.constant 0 : i32
    %c0_i32_0 = arith.constant 0 : i32
    return %arg0, %c0_i32 : i32, i32
  }
  func.func @transform_1(%arg0: i32) -> (i32, i32) {
    %c0_i32 = arith.constant 0 : i32
    %c0_i32_0 = arith.constant 0 : i32
    %c0_i32_1 = arith.constant 0 : i32
    return %c0_i32, %c0_i32_0 : i32, i32
  }
  func.func @transform_2(%arg0: i32) -> (i32, i32) {
    %c0_i32 = arith.constant 0 : i32
    %c0_i32_0 = arith.constant 0 : i32
    %c0_i32_1 = arith.constant 0 : i32
    return %c0_i32, %c0_i32_0 : i32, i32
  }
  func.func @transform_3(%arg0: i32) -> (i32, i32) {
    %c0_i32 = arith.constant 0 : i32
    %c0_i32_0 = arith.constant 0 : i32
    %c0_i32_1 = arith.constant 0 : i32
    return %c0_i32, %c0_i32_0 : i32, i32
  }
  func.func @transform_4(%arg0: i32) -> (i32, i32) {
    %c0_i32 = arith.constant 0 : i32
    %c0_i32_0 = arith.constant 0 : i32
    %c0_i32_1 = arith.constant 0 : i32
    return %c0_i32, %c0_i32_0 : i32, i32
  }
  func.func @transform_5(%arg0: i32) -> (i32, i32) {
    %c0_i32 = arith.constant 0 : i32
    %c0_i32_0 = arith.constant 0 : i32
    %c0_i32_1 = arith.constant 0 : i32
    return %c0_i32, %c0_i32_0 : i32, i32
  }
  func.func @transform_6(%arg0: i32) -> (i32, i32) {
    %c0_i32 = arith.constant 0 : i32
    %c0_i32_0 = arith.constant 0 : i32
    %c0_i32_1 = arith.constant 0 : i32
    return %c0_i32, %c0_i32_0 : i32, i32
  }
  func.func @transform_7(%arg0: i32) -> (i32, i32) {
    %c0_i32 = arith.constant 0 : i32
    %c0_i32_0 = arith.constant 0 : i32
    %c0_i32_1 = arith.constant 0 : i32
    return %c0_i32, %c0_i32_0 : i32, i32
  }
  func.func @transform_8(%arg0: i32) -> (i32, i32) {
    %c0_i32 = arith.constant 0 : i32
    %c0_i32_0 = arith.constant 0 : i32
    %c0_i32_1 = arith.constant 0 : i32
    return %c0_i32, %c0_i32_0 : i32, i32
  }
  func.func @transform_9(%arg0: i32) -> (i32, i32) {
    %c0_i32 = arith.constant 0 : i32
    %c0_i32_0 = arith.constant 0 : i32
    return %c0_i32, %arg0 : i32, i32
  }
}

</mosaic_0001>

<llo_original>
// kernel: mlp2_forward.1
$region0: #{mlp2_forward.1}
  #allocation0 [shape = 'u32[]', space=smem, size = 0x4, offset = 0x4, fixed_abs, tag = 'smem constant byte address 0x4 - core index']
  #allocation1 [shape = 'u32[144,128]{1,0:T(1,128)}', space=vmem, size = 0x12000, scoped, tag = 'internal scratch']
  %s0 = inlined_call_operand.vmem [shape: f32[8,9], index: 0, kind: input, shape index: {}]
  %s1 = inlined_call_operand.vmem [shape: f32[20,9], index: 1, kind: input, shape index: {}]
  %s2 = inlined_call_operand.vmem [shape: f32[20,1], index: 2, kind: input, shape index: {}]
  %s3 = inlined_call_operand.vmem [shape: f32[30,20], index: 3, kind: input, shape index: {}]
  %s4 = inlined_call_operand.vmem [shape: f32[30,1], index: 4, kind: input, shape index: {}]
  %s5 = inlined_call_operand.vmem [shape: f32[10,30], index: 5, kind: input, shape index: {}]
  %s6 = inlined_call_operand.vmem [shape: f32[10,1], index: 6, kind: input, shape index: {}]
  %s7 = inlined_call_operand.vmem [shape: f32[2,10], index: 7, kind: input, shape index: {}]
  %s8 = inlined_call_operand.vmem [shape: f32[2,1], index: 8, kind: input, shape index: {}]
  %s9 = inlined_call_operand.hbm [shape: f32[2,8], index: 9, kind: output, shape index: {}]
  %s10 = sld [smem:[#allocation0]]
  $region46: #{mlp2_forward.1} parent=0
    _
  %s12 = ssub.s32 1, %s10
  %s13 = scalar_select 0, %s12, %s10
  $region1: #{mlp2_forward.1} parent=0
    #allocation2 [shape = 'u8[1024]{0}', space=vmem, size = 0x400, scoped, tag = 'output window, operand 0, single buffered']
    #allocation3 [shape = 's32[1]{0}', space=sflag, size = 0x4, scoped, tag = 'scoped memory for mlp2_forward.1']
    %14 = vsyncpa [#allocation3], 0
    // Predicated region
    $region2: #{mlp2_forward.1} parent=1 // pred_check
      _
    $region3: #{mlp2_forward.1} parent=1 // pred_check_branch
      %16 = sbr.rel (0) target = $region5
    $region4: #{mlp2_forward.1} parent=1 // pred_region
      _
    $region5: #{mlp2_forward.1} parent=1 // pred_fallthru
      _
    // Predicated region
    $region6: #{mlp2_forward.1} parent=1 // pred_check
      _
    $region7: #{mlp2_forward.1} parent=1 // pred_check_branch
      %18 = sbr.rel (0) target = $region9
    $region8: #{mlp2_forward.1} parent=1 // pred_region
      _
    $region9: #{mlp2_forward.1} parent=1 // pred_fallthru
      _
    // Predicated region
    $region10: #{mlp2_forward.1} parent=1 // pred_check
      _
    $region11: #{mlp2_forward.1} parent=1 // pred_check_branch
      %20 = sbr.rel (0) target = $region13
    $region12: #{mlp2_forward.1} parent=1 // pred_region
      _
    $region13: #{mlp2_forward.1} parent=1 // pred_fallthru
      _
    // Predicated region
    $region14: #{mlp2_forward.1} parent=1 // pred_check
      _
    $region15: #{mlp2_forward.1} parent=1 // pred_check_branch
      %22 = sbr.rel (0) target = $region17
    $region16: #{mlp2_forward.1} parent=1 // pred_region
      _
    $region17: #{mlp2_forward.1} parent=1 // pred_fallthru
      _
    // Predicated region
    $region18: #{mlp2_forward.1} parent=1 // pred_check
      _
    $region19: #{mlp2_forward.1} parent=1 // pred_check_branch
      %24 = sbr.rel (0) target = $region21
    $region20: #{mlp2_forward.1} parent=1 // pred_region
      _
    $region21: #{mlp2_forward.1} parent=1 // pred_fallthru
      _
    // Predicated region
    $region22: #{mlp2_forward.1} parent=1 // pred_check
      _
    $region23: #{mlp2_forward.1} parent=1 // pred_check_branch
      %26 = sbr.rel (0) target = $region25
    $region24: #{mlp2_forward.1} parent=1 // pred_region
      _
    $region25: #{mlp2_forward.1} parent=1 // pred_fallthru
      _
    // Predicated region
    $region26: #{mlp2_forward.1} parent=1 // pred_check
      _
    $region27: #{mlp2_forward.1} parent=1 // pred_check_branch
      %28 = sbr.rel (0) target = $region29
    $region28: #{mlp2_forward.1} parent=1 // pred_region
      _
    $region29: #{mlp2_forward.1} parent=1 // pred_fallthru
      _
    // Predicated region
    $region30: #{mlp2_forward.1} parent=1 // pred_check
      _
    $region31: #{mlp2_forward.1} parent=1 // pred_check_branch
      %30 = sbr.rel (0) target = $region33
    $region32: #{mlp2_forward.1} parent=1 // pred_region
      _
    $region33: #{mlp2_forward.1} parent=1 // pred_fallthru
      _
    // Predicated region
    $region34: #{mlp2_forward.1} parent=1 // pred_check
      _
    $region35: #{mlp2_forward.1} parent=1 // pred_check_branch
      %32 = sbr.rel (0) target = $region37
    $region36: #{mlp2_forward.1} parent=1 // pred_region
      _
    $region37: #{mlp2_forward.1} parent=1 // pred_fallthru
      _
    %v33 = vld [vmem:[%s0] sm:$0xff]
    %v34 = vld [vmem:[%s0 + $0x8] sm:$0xff]
    %v35 = vld [vmem:[%s0 + $0x10] sm:$0xff]
    %v36 = vld [vmem:[%s0 + $0x18] sm:$0xff]
    %v37 = vld [vmem:[%s0 + $0x20] sm:$0xff]
    %v38 = vld [vmem:[%s0 + $0x28] sm:$0xff]
    %v39 = vld [vmem:[%s0 + $0x30] sm:$0xff]
    %v40 = vld [vmem:[%s0 + $0x38] sm:$0xff]
    %v41 = vld [vmem:[%s0 + $0x40] sm:$0xff]
    %v42 = vld [vmem:[%s0 + $0x48] sm:$0xff]
    %v43 = vld [vmem:[%s0 + $0x50] sm:$0xff]
    %v44 = vld [vmem:[%s0 + $0x58] sm:$0xff]
    %v45 = vld [vmem:[%s0 + $0x60] sm:$0xff]
    %v46 = vld [vmem:[%s0 + $0x68] sm:$0xff]
    %v47 = vld [vmem:[%s0 + $0x70] sm:$0xff]
    %v48 = vld [vmem:[%s0 + $0x78] sm:$0xff]
    %v49 = vld [vmem:[%s1] sm:$0xff]
    %v50 = vld [vmem:[%s1 + $0x8] sm:$0xff]
    %v51 = vld [vmem:[%s1 + $0x10] sm:$0xf]
    %v52 = vld [vmem:[%s2] sm:$0xff]
    %v53 = vld [vmem:[%s2 + $0x8] sm:$0xff]
    %v54 = vld [vmem:[%s2 + $0x10] sm:$0xf]
    %56 = vset.pattern.permute.xlu0 0
    %57 = vperm.xlu0 %56, %v52
    %v58 = vpop.permute.xlu0 %57
    %61 = vset.pattern.permute.xlu0 0
    %62 = vperm.xlu0 %61, %v53
    %v63 = vpop.permute.xlu0 %62
    %66 = vset.pattern.permute.xlu0 0
    %67 = vperm.xlu0 %66, %v54
    %v68 = vpop.permute.xlu0 %67
    %vm70 = vcmask 72704
    %v72 = vsel %vm70, %v49, 0
    %v75 = vsel %vm70, %v50, 0
    %v78 = vsel %vm70, %v51, 0
    %v81 = vsel %vm70, %v33, 0
    %v84 = vsel %vm70, %v34, 0
    %v87 = vsel %vm70, %v35, 0
    %v90 = vsel %vm70, %v36, 0
    %v93 = vsel %vm70, %v37, 0
    %v96 = vsel %vm70, %v38, 0
    %v99 = vsel %vm70, %v39, 0
    %v102 = vsel %vm70, %v40, 0
    %v105 = vsel %vm70, %v41, 0
    %v108 = vsel %vm70, %v42, 0
    %v111 = vsel %vm70, %v43, 0
    %v114 = vsel %vm70, %v44, 0
    %v117 = vsel %vm70, %v45, 0
    %v120 = vsel %vm70, %v46, 0
    %v123 = vsel %vm70, %v47, 0
    %v126 = vsel %vm70, %v48, 0
    %128 = vmatprep.subr.mxu0 0.0
    %v129 = vand.u32 %v126, 4294901760
    %130 = vmatpush1.xpose.msra.mxu0 %v129
    %131 = vmatprep.subr.mxu0 0.0
    %v132 = vand.u32 %v123, 4294901760
    %133 = vmatpush1.xpose.msra.mxu0 %v132
    %134 = vmatprep.subr.mxu0 0.0
    %v135 = vand.u32 %v120, 4294901760
    %136 = vmatpush1.xpose.msra.mxu0 %v135
    %137 = vmatprep.subr.mxu0 0.0
    %v138 = vand.u32 %v117, 4294901760
    %139 = vmatpush1.xpose.msra.mxu0 %v138
    %140 = vmatprep.subr.mxu0 0.0
    %v141 = vand.u32 %v114, 4294901760
    %142 = vmatpush1.xpose.msra.mxu0 %v141
    %143 = vmatprep.subr.mxu0 0.0
    %v144 = vand.u32 %v111, 4294901760
    %145 = vmatpush1.xpose.msra.mxu0 %v144
    %146 = vmatprep.subr.mxu0 0.0
    %v147 = vand.u32 %v108, 4294901760
    %148 = vmatpush1.xpose.msra.mxu0 %v147
    %149 = vmatprep.subr.mxu0 0.0
    %v150 = vand.u32 %v105, 4294901760
    %151 = vmatpush1.xpose.msra.mxu0 %v150
    %152 = vmatprep.subr.mxu0 0.0
    %v153 = vand.u32 %v102, 4294901760
    %154 = vmatpush1.xpose.msra.mxu0 %v153
    %155 = vmatprep.subr.mxu0 0.0
    %v156 = vand.u32 %v99, 4294901760
    %157 = vmatpush1.xpose.msra.mxu0 %v156
    %158 = vmatprep.subr.mxu0 0.0
    %v159 = vand.u32 %v96, 4294901760
    %160 = vmatpush1.xpose.msra.mxu0 %v159
    %161 = vmatprep.subr.mxu0 0.0
    %v162 = vand.u32 %v93, 4294901760
    %163 = vmatpush1.xpose.msra.mxu0 %v162
    %164 = vmatprep.subr.mxu0 0.0
    %v165 = vand.u32 %v90, 4294901760
    %166 = vmatpush1.xpose.msra.mxu0 %v165
    %167 = vmatprep.subr.mxu0 0.0
    %v168 = vand.u32 %v87, 4294901760
    %169 = vmatpush1.xpose.msra.mxu0 %v168
    %170 = vmatprep.subr.mxu0 0.0
    %v171 = vand.u32 %v84, 4294901760
    %172 = vmatpush1.xpose.msra.mxu0 %v171
    %173 = vmatprep.subr.mxu0 0.0
    %v174 = vand.u32 %v81, 4294901760
    %175 = vmatpush1.xpose.msra.mxu0 %v174
    %176 = vmatprep.subr.mxu0 0.0
    %177 = vmatpush2.xpose.msra.mxu0 0.0
    %178 = vmatprep.subr.mxu0 0.0
    %179 = vmatpush2.xpose.msra.mxu0 0.0
    %180 = vmatprep.subr.mxu0 0.0
    %181 = vmatpush2.xpose.msra.mxu0 0.0
    %182 = vmatprep.subr.mxu0 0.0
    %183 = vmatpush2.xpose.msra.mxu0 0.0
    %184 = vmatprep.subr.mxu0 0.0
    %185 = vmatpush2.xpose.msra.mxu0 0.0
    %186 = vmatprep.subr.mxu0 0.0
    %187 = vmatpush2.xpose.msra.mxu0 0.0
    %188 = vmatprep.subr.mxu0 0.0
    %189 = vmatpush2.xpose.msra.mxu0 0.0
    %190 = vmatprep.subr.mxu0 0.0
    %191 = vmatpush2.xpose.msra.mxu0 0.0
    %192 = vmatprep.subr.mxu0 0.0
    %193 = vmatpush2.xpose.msra.mxu0 0.0
    %194 = vmatprep.subr.mxu0 0.0
    %195 = vmatpush2.xpose.msra.mxu0 0.0
    %196 = vmatprep.subr.mxu0 0.0
    %197 = vmatpush2.xpose.msra.mxu0 0.0
    %198 = vmatprep.subr.mxu0 0.0
    %199 = vmatpush2.xpose.msra.mxu0 0.0
    %200 = vmatprep.subr.mxu0 0.0
    %201 = vmatpush2.xpose.msra.mxu0 0.0
    %202 = vmatprep.subr.mxu0 0.0
    %203 = vmatpush2.xpose.msra.mxu0 0.0
    %204 = vmatprep.subr.mxu0 0.0
    %205 = vmatpush2.xpose.msra.mxu0 0.0
    %206 = vmatprep.subr.mxu0 0.0
    %207 = vmatpush2.xpose.msra.mxu0 0.0
    %208 = vmatprep.mubr.f32.mxu0 0.0
    %v209 = vand.u32 %v72, 4294901760
    %v210 = vsub.f32 %v72, %v209
    %v211 = vand.u32 %v210, 4294901760
    %v212 = vsub.f32 %v210, %v211
    %v213 = vand.u32 %v212, 4294901760
    %214 = vmatmul.mubr.f32.gmra.mxu0 %v213
    %v215 = vpop.f32.mrf.mxu0
    %v216 = vadd.f32 %v58, %v215
    %v217 = vpop.f32.mrf.mxu0
    %218 = vmatprep.mubr.f32.mxu0 0.0
    %v219 = vand.u32 %v75, 4294901760
    %v220 = vsub.f32 %v75, %v219
    %v221 = vand.u32 %v220, 4294901760
    %v222 = vsub.f32 %v220, %v221
    %v223 = vand.u32 %v222, 4294901760
    %224 = vmatmul.mubr.f32.gmra.mxu0 %v223
    %v225 = vpop.f32.mrf.mxu0
    %v226 = vadd.f32 %v63, %v225
    %v227 = vpop.f32.mrf.mxu0
    %228 = vmatprep.mubr.f32.mxu0 0.0
    %v229 = vand.u32 %v78, 4294901760
    %v230 = vsub.f32 %v78, %v229
    %v231 = vand.u32 %v230, 4294901760
    %v232 = vsub.f32 %v230, %v231
    %v233 = vand.u32 %v232, 4294901760
    %234 = vmatmul.mubr.f32.gmra.mxu0 %v233
    %v235 = vpop.f32.mrf.mxu0
    %v236 = vadd.f32 %v68, %v235
    %v237 = vpop.f32.mrf.mxu0
    %238 = vdwg.mxu0
    %239 = vmatprep.subr.mxu0 0.0
    %v240 = vand.u32 %v126, 4294901760
    %v241 = vsub.f32 %v126, %v240
    %v242 = vand.u32 %v241, 4294901760
    %v243 = vsub.f32 %v241, %v242
    %v244 = vand.u32 %v243, 4294901760
    %245 = vmatpush1.xpose.msra.mxu0 %v244
    %246 = vmatprep.subr.mxu0 0.0
    %v247 = vand.u32 %v123, 4294901760
    %v248 = vsub.f32 %v123, %v247
    %v249 = vand.u32 %v248, 4294901760
    %v250 = vsub.f32 %v248, %v249
    %v251 = vand.u32 %v250, 4294901760
    %252 = vmatpush1.xpose.msra.mxu0 %v251
    %253 = vmatprep.subr.mxu0 0.0
    %v254 = vand.u32 %v120, 4294901760
    %v255 = vsub.f32 %v120, %v254
    %v256 = vand.u32 %v255, 4294901760
    %v257 = vsub.f32 %v255, %v256
    %v258 = vand.u32 %v257, 4294901760
    %259 = vmatpush1.xpose.msra.mxu0 %v258
    %260 = vmatprep.subr.mxu0 0.0
    %v261 = vand.u32 %v117, 4294901760
    %v262 = vsub.f32 %v117, %v261
    %v263 = vand.u32 %v262, 4294901760
    %v264 = vsub.f32 %v262, %v263
    %v265 = vand.u32 %v264, 4294901760
    %266 = vmatpush1.xpose.msra.mxu0 %v265
    %267 = vmatprep.subr.mxu0 0.0
    %v268 = vand.u32 %v114, 4294901760
    %v269 = vsub.f32 %v114, %v268
    %v270 = vand.u32 %v269, 4294901760
    %v271 = vsub.f32 %v269, %v270
    %v272 = vand.u32 %v271, 4294901760
    %273 = vmatpush1.xpose.msra.mxu0 %v272
    %274 = vmatprep.subr.mxu0 0.0
    %v275 = vand.u32 %v111, 4294901760
    %v276 = vsub.f32 %v111, %v275
    %v277 = vand.u32 %v276, 4294901760
    %v278 = vsub.f32 %v276, %v277
    %v279 = vand.u32 %v278, 4294901760
    %280 = vmatpush1.xpose.msra.mxu0 %v279
    %281 = vmatprep.subr.mxu0 0.0
    %v282 = vand.u32 %v108, 4294901760
    %v283 = vsub.f32 %v108, %v282
    %v284 = vand.u32 %v283, 4294901760
    %v285 = vsub.f32 %v283, %v284
    %v286 = vand.u32 %v285, 4294901760
    %287 = vmatpush1.xpose.msra.mxu0 %v286
    %288 = vmatprep.subr.mxu0 0.0
    %v289 = vand.u32 %v105, 4294901760
    %v290 = vsub.f32 %v105, %v289
    %v291 = vand.u32 %v290, 4294901760
    %v292 = vsub.f32 %v290, %v291
    %v293 = vand.u32 %v292, 4294901760
    %294 = vmatpush1.xpose.msra.mxu0 %v293
    %295 = vmatprep.subr.mxu0 0.0
    %v296 = vand.u32 %v102, 4294901760
    %v297 = vsub.f32 %v102, %v296
    %v298 = vand.u32 %v297, 4294901760
    %v299 = vsub.f32 %v297, %v298
    %v300 = vand.u32 %v299, 4294901760
    %301 = vmatpush1.xpose.msra.mxu0 %v300
    %302 = vmatprep.subr.mxu0 0.0
    %v303 = vand.u32 %v99, 4294901760
    %v304 = vsub.f32 %v99, %v303
    %v305 = vand.u32 %v304, 4294901760
    %v306 = vsub.f32 %v304, %v305
    %v307 = vand.u32 %v306, 4294901760
    %308 = vmatpush1.xpose.msra.mxu0 %v307
    %309 = vmatprep.subr.mxu0 0.0
    %v310 = vand.u32 %v96, 4294901760
    %v311 = vsub.f32 %v96, %v310
    %v312 = vand.u32 %v311, 4294901760
    %v313 = vsub.f32 %v311, %v312
    %v314 = vand.u32 %v313, 4294901760
    %315 = vmatpush1.xpose.msra.mxu0 %v314
    %316 = vmatprep.subr.mxu0 0.0
    %v317 = vand.u32 %v93, 4294901760
    %v318 = vsub.f32 %v93, %v317
    %v319 = vand.u32 %v318, 4294901760
    %v320 = vsub.f32 %v318, %v319
    %v321 = vand.u32 %v320, 4294901760
    %322 = vmatpush1.xpose.msra.mxu0 %v321
    %323 = vmatprep.subr.mxu0 0.0
    %v324 = vand.u32 %v90, 4294901760
    %v325 = vsub.f32 %v90, %v324
    %v326 = vand.u32 %v325, 4294901760
    %v327 = vsub.f32 %v325, %v326
    %v328 = vand.u32 %v327, 4294901760
    %329 = vmatpush1.xpose.msra.mxu0 %v328
    %330 = vmatprep.subr.mxu0 0.0
    %v331 = vand.u32 %v87, 4294901760
    %v332 = vsub.f32 %v87, %v331
    %v333 = vand.u32 %v332, 4294901760
    %v334 = vsub.f32 %v332, %v333
    %v335 = vand.u32 %v334, 4294901760
    %336 = vmatpush1.xpose.msra.mxu0 %v335
    %337 = vmatprep.subr.mxu0 0.0
    %v338 = vand.u32 %v84, 4294901760
    %v339 = vsub.f32 %v84, %v338
    %v340 = vand.u32 %v339, 4294901760
    %v341 = vsub.f32 %v339, %v340
    %v342 = vand.u32 %v341, 4294901760
    %343 = vmatpush1.xpose.msra.mxu0 %v342
    %344 = vmatprep.subr.mxu0 0.0
    %v345 = vand.u32 %v81, 4294901760
    %v346 = vsub.f32 %v81, %v345
    %v347 = vand.u32 %v346, 4294901760
    %v348 = vsub.f32 %v346, %v347
    %v349 = vand.u32 %v348, 4294901760
    %350 = vmatpush1.xpose.msra.mxu0 %v349
    %351 = vmatprep.subr.mxu0 0.0
    %352 = vmatpush2.xpose.msra.mxu0 0.0
    %353 = vmatprep.subr.mxu0 0.0
    %354 = vmatpush2.xpose.msra.mxu0 0.0
    %355 = vmatprep.subr.mxu0 0.0
    %356 = vmatpush2.xpose.msra.mxu0 0.0
    %357 = vmatprep.subr.mxu0 0.0
    %358 = vmatpush2.xpose.msra.mxu0 0.0
    %359 = vmatprep.subr.mxu0 0.0
    %360 = vmatpush2.xpose.msra.mxu0 0.0
    %361 = vmatprep.subr.mxu0 0.0
    %362 = vmatpush2.xpose.msra.mxu0 0.0
    %363 = vmatprep.subr.mxu0 0.0
    %364 = vmatpush2.xpose.msra.mxu0 0.0
    %365 = vmatprep.subr.mxu0 0.0
    %366 = vmatpush2.xpose.msra.mxu0 0.0
    %367 = vmatprep.subr.mxu0 0.0
    %368 = vmatpush2.xpose.msra.mxu0 0.0
    %369 = vmatprep.subr.mxu0 0.0
    %370 = vmatpush2.xpose.msra.mxu0 0.0
    %371 = vmatprep.subr.mxu0 0.0
    %372 = vmatpush2.xpose.msra.mxu0 0.0
    %373 = vmatprep.subr.mxu0 0.0
    %374 = vmatpush2.xpose.msra.mxu0 0.0
    %375 = vmatprep.subr.mxu0 0.0
    %376 = vmatpush2.xpose.msra.mxu0 0.0
    %377 = vmatprep.subr.mxu0 0.0
    %378 = vmatpush2.xpose.msra.mxu0 0.0
    %379 = vmatprep.subr.mxu0 0.0
    %380 = vmatpush2.xpose.msra.mxu0 0.0
    %381 = vmatprep.subr.mxu0 0.0
    %382 = vmatpush2.xpose.msra.mxu0 0.0
    %383 = vmatprep.mubr.f32.mxu0 0.0
    %v384 = vand.u32 %v72, 4294901760
    %385 = vmatmul.mubr.f32.gmra.mxu0 %v384
    %v386 = vpop.f32.mrf.mxu0
    %v387 = vadd.f32 %v216, %v386
    %v388 = vpop.f32.mrf.mxu0
    %389 = vmatprep.mubr.f32.mxu0 0.0
    %v390 = vand.u32 %v75, 4294901760
    %391 = vmatmul.mubr.f32.gmra.mxu0 %v390
    %v392 = vpop.f32.mrf.mxu0
    %v393 = vadd.f32 %v226, %v392
    %v394 = vpop.f32.mrf.mxu0
    %395 = vmatprep.mubr.f32.mxu0 0.0
    %v396 = vand.u32 %v78, 4294901760
    %397 = vmatmul.mubr.f32.gmra.mxu0 %v396
    %v398 = vpop.f32.mrf.mxu0
    %v399 = vadd.f32 %v236, %v398
    %v400 = vpop.f32.mrf.mxu0
    %401 = vdwg.mxu0
    %402 = vmatprep.subr.mxu0 0.0
    %v403 = vand.u32 %v126, 4294901760
    %v404 = vsub.f32 %v126, %v403
    %405 = vmatpush1.xpose.msra.mxu0 %v404
    %406 = vmatprep.subr.mxu0 0.0
    %v407 = vand.u32 %v123, 4294901760
    %v408 = vsub.f32 %v123, %v407
    %409 = vmatpush1.xpose.msra.mxu0 %v408
    %410 = vmatprep.subr.mxu0 0.0
    %v411 = vand.u32 %v120, 4294901760
    %v412 = vsub.f32 %v120, %v411
    %413 = vmatpush1.xpose.msra.mxu0 %v412
    %414 = vmatprep.subr.mxu0 0.0
    %v415 = vand.u32 %v117, 4294901760
    %v416 = vsub.f32 %v117, %v415
    %417 = vmatpush1.xpose.msra.mxu0 %v416
    %418 = vmatprep.subr.mxu0 0.0
    %v419 = vand.u32 %v114, 4294901760
    %v420 = vsub.f32 %v114, %v419
    %421 = vmatpush1.xpose.msra.mxu0 %v420
    %422 = vmatprep.subr.mxu0 0.0
    %v423 = vand.u32 %v111, 4294901760
    %v424 = vsub.f32 %v111, %v423
    %425 = vmatpush1.xpose.msra.mxu0 %v424
    %426 = vmatprep.subr.mxu0 0.0
    %v427 = vand.u32 %v108, 4294901760
    %v428 = vsub.f32 %v108, %v427
    %429 = vmatpush1.xpose.msra.mxu0 %v428
    %430 = vmatprep.subr.mxu0 0.0
    %v431 = vand.u32 %v105, 4294901760
    %v432 = vsub.f32 %v105, %v431
    %433 = vmatpush1.xpose.msra.mxu0 %v432
    %434 = vmatprep.subr.mxu0 0.0
    %v435 = vand.u32 %v102, 4294901760
    %v436 = vsub.f32 %v102, %v435
    %437 = vmatpush1.xpose.msra.mxu0 %v436
    %438 = vmatprep.subr.mxu0 0.0
    %v439 = vand.u32 %v99, 4294901760
    %v440 = vsub.f32 %v99, %v439
    %441 = vmatpush1.xpose.msra.mxu0 %v440
    %442 = vmatprep.subr.mxu0 0.0
    %v443 = vand.u32 %v96, 4294901760
    %v444 = vsub.f32 %v96, %v443
    %445 = vmatpush1.xpose.msra.mxu0 %v444
    %446 = vmatprep.subr.mxu0 0.0
    %v447 = vand.u32 %v93, 4294901760
    %v448 = vsub.f32 %v93, %v447
    %449 = vmatpush1.xpose.msra.mxu0 %v448
    %450 = vmatprep.subr.mxu0 0.0
    %v451 = vand.u32 %v90, 4294901760
    %v452 = vsub.f32 %v90, %v451
    %453 = vmatpush1.xpose.msra.mxu0 %v452
    %454 = vmatprep.subr.mxu0 0.0
    %v455 = vand.u32 %v87, 4294901760
    %v456 = vsub.f32 %v87, %v455
    %457 = vmatpush1.xpose.msra.mxu0 %v456
    %458 = vmatprep.subr.mxu0 0.0
    %v459 = vand.u32 %v84, 4294901760
    %v460 = vsub.f32 %v84, %v459
    %461 = vmatpush1.xpose.msra.mxu0 %v460
    %462 = vmatprep.subr.mxu0 0.0
    %v463 = vand.u32 %v81, 4294901760
    %v464 = vsub.f32 %v81, %v463
    %465 = vmatpush1.xpose.msra.mxu0 %v464
    %466 = vmatprep.subr.mxu0 0.0
    %467 = vmatpush2.xpose.msra.mxu0 0.0
    %468 = vmatprep.subr.mxu0 0.0
    %469 = vmatpush2.xpose.msra.mxu0 0.0
    %470 = vmatprep.subr.mxu0 0.0
    %471 = vmatpush2.xpose.msra.mxu0 0.0
    %472 = vmatprep.subr.mxu0 0.0
    %473 = vmatpush2.xpose.msra.mxu0 0.0
    %474 = vmatprep.subr.mxu0 0.0
    %475 = vmatpush2.xpose.msra.mxu0 0.0
    %476 = vmatprep.subr.mxu0 0.0
    %477 = vmatpush2.xpose.msra.mxu0 0.0
    %478 = vmatprep.subr.mxu0 0.0
    %479 = vmatpush2.xpose.msra.mxu0 0.0
    %480 = vmatprep.subr.mxu0 0.0
    %481 = vmatpush2.xpose.msra.mxu0 0.0
    %482 = vmatprep.subr.mxu0 0.0
    %483 = vmatpush2.xpose.msra.mxu0 0.0
    %484 = vmatprep.subr.mxu0 0.0
    %485 = vmatpush2.xpose.msra.mxu0 0.0
    %486 = vmatprep.subr.mxu0 0.0
    %487 = vmatpush2.xpose.msra.mxu0 0.0
    %488 = vmatprep.subr.mxu0 0.0
    %489 = vmatpush2.xpose.msra.mxu0 0.0
    %490 = vmatprep.subr.mxu0 0.0
    %491 = vmatpush2.xpose.msra.mxu0 0.0
    %492 = vmatprep.subr.mxu0 0.0
    %493 = vmatpush2.xpose.msra.mxu0 0.0
    %494 = vmatprep.subr.mxu0 0.0
    %495 = vmatpush2.xpose.msra.mxu0 0.0
    %496 = vmatprep.subr.mxu0 0.0
    %497 = vmatpush2.xpose.msra.mxu0 0.0
    %498 = vmatprep.mubr.f32.mxu0 0.0
    %v499 = vand.u32 %v72, 4294901760
    %v500 = vsub.f32 %v72, %v499
    %501 = vmatmul.mubr.f32.gmra.mxu0 %v500
    %v502 = vpop.f32.mrf.mxu0
    %v503 = vadd.f32 %v387, %v502
    %v504 = vpop.f32.mrf.mxu0
    %505 = vmatprep.mubr.f32.mxu0 0.0
    %v506 = vand.u32 %v75, 4294901760
    %v507 = vsub.f32 %v75, %v506
    %508 = vmatmul.mubr.f32.gmra.mxu0 %v507
    %v509 = vpop.f32.mrf.mxu0
    %v510 = vadd.f32 %v393, %v509
    %v511 = vpop.f32.mrf.mxu0
    %512 = vmatprep.mubr.f32.mxu0 0.0
    %v513 = vand.u32 %v78, 4294901760
    %v514 = vsub.f32 %v78, %v513
    %515 = vmatmul.mubr.f32.gmra.mxu0 %v514
    %v516 = vpop.f32.mrf.mxu0
    %v517 = vadd.f32 %v399, %v516
    %v518 = vpop.f32.mrf.mxu0
    %519 = vdwg.mxu0
    %520 = vmatprep.subr.mxu0 0.0
    %v521 = vand.u32 %v126, 4294901760
    %522 = vmatpush1.xpose.msra.mxu0 %v521
    %523 = vmatprep.subr.mxu0 0.0
    %v524 = vand.u32 %v123, 4294901760
    %525 = vmatpush1.xpose.msra.mxu0 %v524
    %526 = vmatprep.subr.mxu0 0.0
    %v527 = vand.u32 %v120, 4294901760
    %528 = vmatpush1.xpose.msra.mxu0 %v527
    %529 = vmatprep.subr.mxu0 0.0
    %v530 = vand.u32 %v117, 4294901760
    %531 = vmatpush1.xpose.msra.mxu0 %v530
    %532 = vmatprep.subr.mxu0 0.0
    %v533 = vand.u32 %v114, 4294901760
    %534 = vmatpush1.xpose.msra.mxu0 %v533
    %535 = vmatprep.subr.mxu0 0.0
    %v536 = vand.u32 %v111, 4294901760
    %537 = vmatpush1.xpose.msra.mxu0 %v536
    %538 = vmatprep.subr.mxu0 0.0
    %v539 = vand.u32 %v108, 4294901760
    %540 = vmatpush1.xpose.msra.mxu0 %v539
    %541 = vmatprep.subr.mxu0 0.0
    %v542 = vand.u32 %v105, 4294901760
    %543 = vmatpush1.xpose.msra.mxu0 %v542
    %544 = vmatprep.subr.mxu0 0.0
    %v545 = vand.u32 %v102, 4294901760
    %546 = vmatpush1.xpose.msra.mxu0 %v545
    %547 = vmatprep.subr.mxu0 0.0
    %v548 = vand.u32 %v99, 4294901760
    %549 = vmatpush1.xpose.msra.mxu0 %v548
    %550 = vmatprep.subr.mxu0 0.0
    %v551 = vand.u32 %v96, 4294901760
    %552 = vmatpush1.xpose.msra.mxu0 %v551
    %553 = vmatprep.subr.mxu0 0.0
    %v554 = vand.u32 %v93, 4294901760
    %555 = vmatpush1.xpose.msra.mxu0 %v554
    %556 = vmatprep.subr.mxu0 0.0
    %v557 = vand.u32 %v90, 4294901760
    %558 = vmatpush1.xpose.msra.mxu0 %v557
    %559 = vmatprep.subr.mxu0 0.0
    %v560 = vand.u32 %v87, 4294901760
    %561 = vmatpush1.xpose.msra.mxu0 %v560
    %562 = vmatprep.subr.mxu0 0.0
    %v563 = vand.u32 %v84, 4294901760
    %564 = vmatpush1.xpose.msra.mxu0 %v563
    %565 = vmatprep.subr.mxu0 0.0
    %v566 = vand.u32 %v81, 4294901760
    %567 = vmatpush1.xpose.msra.mxu0 %v566
    %568 = vmatprep.subr.mxu0 0.0
    %569 = vmatpush2.xpose.msra.mxu0 0.0
    %570 = vmatprep.subr.mxu0 0.0
    %571 = vmatpush2.xpose.msra.mxu0 0.0
    %572 = vmatprep.subr.mxu0 0.0
    %573 = vmatpush2.xpose.msra.mxu0 0.0
    %574 = vmatprep.subr.mxu0 0.0
    %575 = vmatpush2.xpose.msra.mxu0 0.0
    %576 = vmatprep.subr.mxu0 0.0
    %577 = vmatpush2.xpose.msra.mxu0 0.0
    %578 = vmatprep.subr.mxu0 0.0
    %579 = vmatpush2.xpose.msra.mxu0 0.0
    %580 = vmatprep.subr.mxu0 0.0
    %581 = vmatpush2.xpose.msra.mxu0 0.0
    %582 = vmatprep.subr.mxu0 0.0
    %583 = vmatpush2.xpose.msra.mxu0 0.0
    %584 = vmatprep.subr.mxu0 0.0
    %585 = vmatpush2.xpose.msra.mxu0 0.0
    %586 = vmatprep.subr.mxu0 0.0
    %587 = vmatpush2.xpose.msra.mxu0 0.0
    %588 = vmatprep.subr.mxu0 0.0
    %589 = vmatpush2.xpose.msra.mxu0 0.0
    %590 = vmatprep.subr.mxu0 0.0
    %591 = vmatpush2.xpose.msra.mxu0 0.0
    %592 = vmatprep.subr.mxu0 0.0
    %593 = vmatpush2.xpose.msra.mxu0 0.0
    %594 = vmatprep.subr.mxu0 0.0
    %595 = vmatpush2.xpose.msra.mxu0 0.0
    %596 = vmatprep.subr.mxu0 0.0
    %597 = vmatpush2.xpose.msra.mxu0 0.0
    %598 = vmatprep.subr.mxu0 0.0
    %599 = vmatpush2.xpose.msra.mxu0 0.0
    %600 = vmatprep.mubr.f32.mxu0 0.0
    %v601 = vand.u32 %v72, 4294901760
    %v602 = vsub.f32 %v72, %v601
    %v603 = vand.u32 %v602, 4294901760
    %604 = vmatmul.mubr.f32.gmra.mxu0 %v603
    %v605 = vpop.f32.mrf.mxu0
    %v606 = vadd.f32 %v503, %v605
    %v607 = vpop.f32.mrf.mxu0
    %608 = vmatprep.mubr.f32.mxu0 0.0
    %v609 = vand.u32 %v75, 4294901760
    %v610 = vsub.f32 %v75, %v609
    %v611 = vand.u32 %v610, 4294901760
    %612 = vmatmul.mubr.f32.gmra.mxu0 %v611
    %v613 = vpop.f32.mrf.mxu0
    %v614 = vadd.f32 %v510, %v613
    %v615 = vpop.f32.mrf.mxu0
    %616 = vmatprep.mubr.f32.mxu0 0.0
    %v617 = vand.u32 %v78, 4294901760
    %v618 = vsub.f32 %v78, %v617
    %v619 = vand.u32 %v618, 4294901760
    %620 = vmatmul.mubr.f32.gmra.mxu0 %v619
    %v621 = vpop.f32.mrf.mxu0
    %v622 = vadd.f32 %v517, %v621
    %v623 = vpop.f32.mrf.mxu0
    %624 = vdwg.mxu0
    %625 = vmatprep.subr.mxu0 0.0
    %v626 = vand.u32 %v126, 4294901760
    %v627 = vsub.f32 %v126, %v626
    %v628 = vand.u32 %v627, 4294901760
    %629 = vmatpush1.xpose.msra.mxu0 %v628
    %630 = vmatprep.subr.mxu0 0.0
    %v631 = vand.u32 %v123, 4294901760
    %v632 = vsub.f32 %v123, %v631
    %v633 = vand.u32 %v632, 4294901760
    %634 = vmatpush1.xpose.msra.mxu0 %v633
    %635 = vmatprep.subr.mxu0 0.0
    %v636 = vand.u32 %v120, 4294901760
    %v637 = vsub.f32 %v120, %v636
    %v638 = vand.u32 %v637, 4294901760
    %639 = vmatpush1.xpose.msra.mxu0 %v638
    %640 = vmatprep.subr.mxu0 0.0
    %v641 = vand.u32 %v117, 4294901760
    %v642 = vsub.f32 %v117, %v641
    %v643 = vand.u32 %v642, 4294901760
    %644 = vmatpush1.xpose.msra.mxu0 %v643
    %645 = vmatprep.subr.mxu0 0.0
    %v646 = vand.u32 %v114, 4294901760
    %v647 = vsub.f32 %v114, %v646
    %v648 = vand.u32 %v647, 4294901760
    %649 = vmatpush1.xpose.msra.mxu0 %v648
    %650 = vmatprep.subr.mxu0 0.0
    %v651 = vand.u32 %v111, 4294901760
    %v652 = vsub.f32 %v111, %v651
    %v653 = vand.u32 %v652, 4294901760
    %654 = vmatpush1.xpose.msra.mxu0 %v653
    %655 = vmatprep.subr.mxu0 0.0
    %v656 = vand.u32 %v108, 4294901760
    %v657 = vsub.f32 %v108, %v656
    %v658 = vand.u32 %v657, 4294901760
    %659 = vmatpush1.xpose.msra.mxu0 %v658
    %660 = vmatprep.subr.mxu0 0.0
    %v661 = vand.u32 %v105, 4294901760
    %v662 = vsub.f32 %v105, %v661
    %v663 = vand.u32 %v662, 4294901760
    %664 = vmatpush1.xpose.msra.mxu0 %v663
    %665 = vmatprep.subr.mxu0 0.0
    %v666 = vand.u32 %v102, 4294901760
    %v667 = vsub.f32 %v102, %v666
    %v668 = vand.u32 %v667, 4294901760
    %669 = vmatpush1.xpose.msra.mxu0 %v668
    %670 = vmatprep.subr.mxu0 0.0
    %v671 = vand.u32 %v99, 4294901760
    %v672 = vsub.f32 %v99, %v671
    %v673 = vand.u32 %v672, 4294901760
    %674 = vmatpush1.xpose.msra.mxu0 %v673
    %675 = vmatprep.subr.mxu0 0.0
    %v676 = vand.u32 %v96, 4294901760
    %v677 = vsub.f32 %v96, %v676
    %v678 = vand.u32 %v677, 4294901760
    %679 = vmatpush1.xpose.msra.mxu0 %v678
    %680 = vmatprep.subr.mxu0 0.0
    %v681 = vand.u32 %v93, 4294901760
    %v682 = vsub.f32 %v93, %v681
    %v683 = vand.u32 %v682, 4294901760
    %684 = vmatpush1.xpose.msra.mxu0 %v683
    %685 = vmatprep.subr.mxu0 0.0
    %v686 = vand.u32 %v90, 4294901760
    %v687 = vsub.f32 %v90, %v686
    %v688 = vand.u32 %v687, 4294901760
    %689 = vmatpush1.xpose.msra.mxu0 %v688
    %690 = vmatprep.subr.mxu0 0.0
    %v691 = vand.u32 %v87, 4294901760
    %v692 = vsub.f32 %v87, %v691
    %v693 = vand.u32 %v692, 4294901760
    %694 = vmatpush1.xpose.msra.mxu0 %v693
    %695 = vmatprep.subr.mxu0 0.0
    %v696 = vand.u32 %v84, 4294901760
    %v697 = vsub.f32 %v84, %v696
    %v698 = vand.u32 %v697, 4294901760
    %699 = vmatpush1.xpose.msra.mxu0 %v698
    %700 = vmatprep.subr.mxu0 0.0
    %v701 = vand.u32 %v81, 4294901760
    %v702 = vsub.f32 %v81, %v701
    %v703 = vand.u32 %v702, 4294901760
    %704 = vmatpush1.xpose.msra.mxu0 %v703
    %705 = vmatprep.subr.mxu0 0.0
    %706 = vmatpush2.xpose.msra.mxu0 0.0
    %707 = vmatprep.subr.mxu0 0.0
    %708 = vmatpush2.xpose.msra.mxu0 0.0
    %709 = vmatprep.subr.mxu0 0.0
    %710 = vmatpush2.xpose.msra.mxu0 0.0
    %711 = vmatprep.subr.mxu0 0.0
    %712 = vmatpush2.xpose.msra.mxu0 0.0
    %713 = vmatprep.subr.mxu0 0.0
    %714 = vmatpush2.xpose.msra.mxu0 0.0
    %715 = vmatprep.subr.mxu0 0.0
    %716 = vmatpush2.xpose.msra.mxu0 0.0
    %717 = vmatprep.subr.mxu0 0.0
    %718 = vmatpush2.xpose.msra.mxu0 0.0
    %719 = vmatprep.subr.mxu0 0.0
    %720 = vmatpush2.xpose.msra.mxu0 0.0
    %721 = vmatprep.subr.mxu0 0.0
    %722 = vmatpush2.xpose.msra.mxu0 0.0
    %723 = vmatprep.subr.mxu0 0.0
    %724 = vmatpush2.xpose.msra.mxu0 0.0
    %725 = vmatprep.subr.mxu0 0.0
    %726 = vmatpush2.xpose.msra.mxu0 0.0
    %727 = vmatprep.subr.mxu0 0.0
    %728 = vmatpush2.xpose.msra.mxu0 0.0
    %729 = vmatprep.subr.mxu0 0.0
    %730 = vmatpush2.xpose.msra.mxu0 0.0
    %731 = vmatprep.subr.mxu0 0.0
    %732 = vmatpush2.xpose.msra.mxu0 0.0
    %733 = vmatprep.subr.mxu0 0.0
    %734 = vmatpush2.xpose.msra.mxu0 0.0
    %735 = vmatprep.subr.mxu0 0.0
    %736 = vmatpush2.xpose.msra.mxu0 0.0
    %737 = vmatprep.mubr.f32.mxu0 0.0
    %v738 = vand.u32 %v72, 4294901760
    %739 = vmatmul.mubr.f32.gmra.mxu0 %v738
    %v740 = vpop.f32.mrf.mxu0
    %v741 = vadd.f32 %v606, %v740
    %v742 = vpop.f32.mrf.mxu0
    %743 = vmatprep.mubr.f32.mxu0 0.0
    %v744 = vand.u32 %v75, 4294901760
    %745 = vmatmul.mubr.f32.gmra.mxu0 %v744
    %v746 = vpop.f32.mrf.mxu0
    %v747 = vadd.f32 %v614, %v746
    %v748 = vpop.f32.mrf.mxu0
    %749 = vmatprep.mubr.f32.mxu0 0.0
    %v750 = vand.u32 %v78, 4294901760
    %751 = vmatmul.mubr.f32.gmra.mxu0 %v750
    %v752 = vpop.f32.mrf.mxu0
    %v753 = vadd.f32 %v622, %v752
    %v754 = vpop.f32.mrf.mxu0
    %755 = vdwg.mxu0
    %756 = vmatprep.subr.mxu0 0.0
    %v757 = vand.u32 %v126, 4294901760
    %758 = vmatpush1.xpose.msra.mxu0 %v757
    %759 = vmatprep.subr.mxu0 0.0
    %v760 = vand.u32 %v123, 4294901760
    %761 = vmatpush1.xpose.msra.mxu0 %v760
    %762 = vmatprep.subr.mxu0 0.0
    %v763 = vand.u32 %v120, 4294901760
    %764 = vmatpush1.xpose.msra.mxu0 %v763
    %765 = vmatprep.subr.mxu0 0.0
    %v766 = vand.u32 %v117, 4294901760
    %767 = vmatpush1.xpose.msra.mxu0 %v766
    %768 = vmatprep.subr.mxu0 0.0
    %v769 = vand.u32 %v114, 4294901760
    %770 = vmatpush1.xpose.msra.mxu0 %v769
    %771 = vmatprep.subr.mxu0 0.0
    %v772 = vand.u32 %v111, 4294901760
    %773 = vmatpush1.xpose.msra.mxu0 %v772
    %774 = vmatprep.subr.mxu0 0.0
    %v775 = vand.u32 %v108, 4294901760
    %776 = vmatpush1.xpose.msra.mxu0 %v775
    %777 = vmatprep.subr.mxu0 0.0
    %v778 = vand.u32 %v105, 4294901760
    %779 = vmatpush1.xpose.msra.mxu0 %v778
    %780 = vmatprep.subr.mxu0 0.0
    %v781 = vand.u32 %v102, 4294901760
    %782 = vmatpush1.xpose.msra.mxu0 %v781
    %783 = vmatprep.subr.mxu0 0.0
    %v784 = vand.u32 %v99, 4294901760
    %785 = vmatpush1.xpose.msra.mxu0 %v784
    %786 = vmatprep.subr.mxu0 0.0
    %v787 = vand.u32 %v96, 4294901760
    %788 = vmatpush1.xpose.msra.mxu0 %v787
    %789 = vmatprep.subr.mxu0 0.0
    %v790 = vand.u32 %v93, 4294901760
    %791 = vmatpush1.xpose.msra.mxu0 %v790
    %792 = vmatprep.subr.mxu0 0.0
    %v793 = vand.u32 %v90, 4294901760
    %794 = vmatpush1.xpose.msra.mxu0 %v793
    %795 = vmatprep.subr.mxu0 0.0
    %v796 = vand.u32 %v87, 4294901760
    %797 = vmatpush1.xpose.msra.mxu0 %v796
    %798 = vmatprep.subr.mxu0 0.0
    %v799 = vand.u32 %v84, 4294901760
    %800 = vmatpush1.xpose.msra.mxu0 %v799
    %801 = vmatprep.subr.mxu0 0.0
    %v802 = vand.u32 %v81, 4294901760
    %803 = vmatpush1.xpose.msra.mxu0 %v802
    %804 = vmatprep.subr.mxu0 0.0
    %805 = vmatpush2.xpose.msra.mxu0 0.0
    %806 = vmatprep.subr.mxu0 0.0
    %807 = vmatpush2.xpose.msra.mxu0 0.0
    %808 = vmatprep.subr.mxu0 0.0
    %809 = vmatpush2.xpose.msra.mxu0 0.0
    %810 = vmatprep.subr.mxu0 0.0
    %811 = vmatpush2.xpose.msra.mxu0 0.0
    %812 = vmatprep.subr.mxu0 0.0
    %813 = vmatpush2.xpose.msra.mxu0 0.0
    %814 = vmatprep.subr.mxu0 0.0
    %815 = vmatpush2.xpose.msra.mxu0 0.0
    %816 = vmatprep.subr.mxu0 0.0
    %817 = vmatpush2.xpose.msra.mxu0 0.0
    %818 = vmatprep.subr.mxu0 0.0
    %819 = vmatpush2.xpose.msra.mxu0 0.0
    %820 = vmatprep.subr.mxu0 0.0
    %821 = vmatpush2.xpose.msra.mxu0 0.0
    %822 = vmatprep.subr.mxu0 0.0
    %823 = vmatpush2.xpose.msra.mxu0 0.0
    %824 = vmatprep.subr.mxu0 0.0
    %825 = vmatpush2.xpose.msra.mxu0 0.0
    %826 = vmatprep.subr.mxu0 0.0
    %827 = vmatpush2.xpose.msra.mxu0 0.0
    %828 = vmatprep.subr.mxu0 0.0
    %829 = vmatpush2.xpose.msra.mxu0 0.0
    %830 = vmatprep.subr.mxu0 0.0
    %831 = vmatpush2.xpose.msra.mxu0 0.0
    %832 = vmatprep.subr.mxu0 0.0
    %833 = vmatpush2.xpose.msra.mxu0 0.0
    %834 = vmatprep.subr.mxu0 0.0
    %835 = vmatpush2.xpose.msra.mxu0 0.0
    %836 = vmatprep.mubr.f32.mxu0 0.0
    %v837 = vand.u32 %v72, 4294901760
    %838 = vmatmul.mubr.f32.gmra.mxu0 %v837
    %v839 = vpop.f32.mrf.mxu0
    %v840 = vadd.f32 %v741, %v839
    %v841 = vpop.f32.mrf.mxu0
    %842 = vmatprep.mubr.f32.mxu0 0.0
    %v843 = vand.u32 %v75, 4294901760
    %844 = vmatmul.mubr.f32.gmra.mxu0 %v843
    %v845 = vpop.f32.mrf.mxu0
    %v846 = vadd.f32 %v747, %v845
    %v847 = vpop.f32.mrf.mxu0
    %848 = vmatprep.mubr.f32.mxu0 0.0
    %v849 = vand.u32 %v78, 4294901760
    %850 = vmatmul.mubr.f32.gmra.mxu0 %v849
    %v851 = vpop.f32.mrf.mxu0
    %v852 = vadd.f32 %v753, %v851
    %v853 = vpop.f32.mrf.mxu0
    %854 = vdwg.mxu0
    %v855 = vmax.f32 %v840, 0.0
    %v856 = vmax.f32 %v846, 0.0
    %v857 = vmax.f32 %v852, 0.0
    %v858 = vld [vmem:[%s3] sm:$0xff]
    %v859 = vld [vmem:[%s3 + $0x8] sm:$0xff]
    %v860 = vld [vmem:[%s3 + $0x10] sm:$0xff]
    %v861 = vld [vmem:[%s3 + $0x18] sm:$0x3f]
    %v862 = vld [vmem:[%s4] sm:$0xff]
    %v863 = vld [vmem:[%s4 + $0x8] sm:$0xff]
    %v864 = vld [vmem:[%s4 + $0x10] sm:$0xff]
    %v865 = vld [vmem:[%s4 + $0x18] sm:$0x3f]
    %867 = vset.pattern.permute.xlu0 0
    %868 = vperm.xlu0 %867, %v862
    %v869 = vpop.permute.xlu0 %868
    %872 = vset.pattern.permute.xlu0 0
    %873 = vperm.xlu0 %872, %v863
    %v874 = vpop.permute.xlu0 %873
    %877 = vset.pattern.permute.xlu0 0
    %878 = vperm.xlu0 %877, %v864
    %v879 = vpop.permute.xlu0 %878
    %882 = vset.pattern.permute.xlu0 0
    %883 = vperm.xlu0 %882, %v865
    %v884 = vpop.permute.xlu0 %883
    %vm886 = vcmask 162816
    %v888 = vsel %vm886, %v858, 0
    %v891 = vsel %vm886, %v859, 0
    %v894 = vsel %vm886, %v860, 0
    %v897 = vsel %vm886, %v861, 0
    %vm899 = vcmask 1043456
    %v901 = vsel %vm899, %v857, 0
    %903 = vmatprep.subr.mxu0 0.0
    %904 = vmatpush1.msra.mxu0 0.0
    %905 = vmatprep.subr.mxu0 0.0
    %906 = vmatpush1.msra.mxu0 0.0
    %907 = vmatprep.subr.mxu0 0.0
    %908 = vmatpush1.msra.mxu0 0.0
    %909 = vmatprep.subr.mxu0 0.0
    %910 = vmatpush1.msra.mxu0 0.0
    %911 = vmatprep.subr.mxu0 0.0
    %912 = vmatpush1.msra.mxu0 0.0
    %913 = vmatprep.subr.mxu0 0.0
    %914 = vmatpush1.msra.mxu0 0.0
    %915 = vmatprep.subr.mxu0 0.0
    %916 = vmatpush1.msra.mxu0 0.0
    %917 = vmatprep.subr.mxu0 0.0
    %918 = vmatpush1.msra.mxu0 0.0
    %919 = vmatprep.subr.mxu0 0.0
    %920 = vmatpush1.msra.mxu0 0.0
    %921 = vmatprep.subr.mxu0 0.0
    %922 = vmatpush1.msra.mxu0 0.0
    %923 = vmatprep.subr.mxu0 0.0
    %924 = vmatpush1.msra.mxu0 0.0
    %925 = vmatprep.subr.mxu0 0.0
    %926 = vmatpush1.msra.mxu0 0.0
    %927 = vmatprep.subr.mxu0 0.0
    %928 = vmatpush1.msra.mxu0 0.0
    %929 = vmatprep.subr.mxu0 0.0
    %v930 = vand.u32 %v901, 4294901760
    %931 = vmatpush1.msra.mxu0 %v930
    %932 = vmatprep.subr.mxu0 0.0
    %v933 = vand.u32 %v856, 4294901760
    %934 = vmatpush1.msra.mxu0 %v933
    %935 = vmatprep.subr.mxu0 0.0
    %v936 = vand.u32 %v855, 4294901760
    %937 = vmatpush1.msra.mxu0 %v936
    %938 = vmatprep.subr.mxu0 0.0
    %939 = vmatpush2.msra.mxu0 0.0
    %940 = vmatprep.subr.mxu0 0.0
    %941 = vmatpush2.msra.mxu0 0.0
    %942 = vmatprep.subr.mxu0 0.0
    %943 = vmatpush2.msra.mxu0 0.0
    %944 = vmatprep.subr.mxu0 0.0
    %945 = vmatpush2.msra.mxu0 0.0
    %946 = vmatprep.subr.mxu0 0.0
    %947 = vmatpush2.msra.mxu0 0.0
    %948 = vmatprep.subr.mxu0 0.0
    %949 = vmatpush2.msra.mxu0 0.0
    %950 = vmatprep.subr.mxu0 0.0
    %951 = vmatpush2.msra.mxu0 0.0
    %952 = vmatprep.subr.mxu0 0.0
    %953 = vmatpush2.msra.mxu0 0.0
    %954 = vmatprep.subr.mxu0 0.0
    %955 = vmatpush2.msra.mxu0 0.0
    %956 = vmatprep.subr.mxu0 0.0
    %957 = vmatpush2.msra.mxu0 0.0
    %958 = vmatprep.subr.mxu0 0.0
    %959 = vmatpush2.msra.mxu0 0.0
    %960 = vmatprep.subr.mxu0 0.0
    %961 = vmatpush2.msra.mxu0 0.0
    %962 = vmatprep.subr.mxu0 0.0
    %963 = vmatpush2.msra.mxu0 0.0
    %964 = vmatprep.subr.mxu0 0.0
    %965 = vmatpush2.msra.mxu0 0.0
    %966 = vmatprep.subr.mxu0 0.0
    %967 = vmatpush2.msra.mxu0 0.0
    %968 = vmatprep.subr.mxu0 0.0
    %969 = vmatpush2.msra.mxu0 0.0
    %970 = vmatprep.mubr.f32.mxu0 0.0
    %v971 = vand.u32 %v888, 4294901760
    %v972 = vsub.f32 %v888, %v971
    %v973 = vand.u32 %v972, 4294901760
    %v974 = vsub.f32 %v972, %v973
    %v975 = vand.u32 %v974, 4294901760
    %976 = vmatmul.mubr.f32.gmra.mxu0 %v975
    %v977 = vpop.f32.mrf.mxu0
    %v978 = vadd.f32 %v869, %v977
    %v979 = vpop.f32.mrf.mxu0
    %980 = vmatprep.mubr.f32.mxu0 0.0
    %v981 = vand.u32 %v891, 4294901760
    %v982 = vsub.f32 %v891, %v981
    %v983 = vand.u32 %v982, 4294901760
    %v984 = vsub.f32 %v982, %v983
    %v985 = vand.u32 %v984, 4294901760
    %986 = vmatmul.mubr.f32.gmra.mxu0 %v985
    %v987 = vpop.f32.mrf.mxu0
    %v988 = vadd.f32 %v874, %v987
    %v989 = vpop.f32.mrf.mxu0
    %990 = vmatprep.mubr.f32.mxu0 0.0
    %v991 = vand.u32 %v894, 4294901760
    %v992 = vsub.f32 %v894, %v991
    %v993 = vand.u32 %v992, 4294901760
    %v994 = vsub.f32 %v992, %v993
    %v995 = vand.u32 %v994, 4294901760
    %996 = vmatmul.mubr.f32.gmra.mxu0 %v995
    %v997 = vpop.f32.mrf.mxu0
    %v998 = vadd.f32 %v879, %v997
    %v999 = vpop.f32.mrf.mxu0
    %1000 = vmatprep.mubr.f32.mxu0 0.0
    %v1001 = vand.u32 %v897, 4294901760
    %v1002 = vsub.f32 %v897, %v1001
    %v1003 = vand.u32 %v1002, 4294901760
    %v1004 = vsub.f32 %v1002, %v1003
    %v1005 = vand.u32 %v1004, 4294901760
    %1006 = vmatmul.mubr.f32.gmra.mxu0 %v1005
    %v1007 = vpop.f32.mrf.mxu0
    %v1008 = vadd.f32 %v884, %v1007
    %v1009 = vpop.f32.mrf.mxu0
    %1010 = vdwg.mxu0
    %1011 = vmatprep.subr.mxu0 0.0
    %1012 = vmatpush1.msra.mxu0 0.0
    %1013 = vmatprep.subr.mxu0 0.0
    %1014 = vmatpush1.msra.mxu0 0.0
    %1015 = vmatprep.subr.mxu0 0.0
    %1016 = vmatpush1.msra.mxu0 0.0
    %1017 = vmatprep.subr.mxu0 0.0
    %1018 = vmatpush1.msra.mxu0 0.0
    %1019 = vmatprep.subr.mxu0 0.0
    %1020 = vmatpush1.msra.mxu0 0.0
    %1021 = vmatprep.subr.mxu0 0.0
    %1022 = vmatpush1.msra.mxu0 0.0
    %1023 = vmatprep.subr.mxu0 0.0
    %1024 = vmatpush1.msra.mxu0 0.0
    %1025 = vmatprep.subr.mxu0 0.0
    %1026 = vmatpush1.msra.mxu0 0.0
    %1027 = vmatprep.subr.mxu0 0.0
    %1028 = vmatpush1.msra.mxu0 0.0
    %1029 = vmatprep.subr.mxu0 0.0
    %1030 = vmatpush1.msra.mxu0 0.0
    %1031 = vmatprep.subr.mxu0 0.0
    %1032 = vmatpush1.msra.mxu0 0.0
    %1033 = vmatprep.subr.mxu0 0.0
    %1034 = vmatpush1.msra.mxu0 0.0
    %1035 = vmatprep.subr.mxu0 0.0
    %1036 = vmatpush1.msra.mxu0 0.0
    %1037 = vmatprep.subr.mxu0 0.0
    %v1038 = vand.u32 %v901, 4294901760
    %v1039 = vsub.f32 %v901, %v1038
    %v1040 = vand.u32 %v1039, 4294901760
    %v1041 = vsub.f32 %v1039, %v1040
    %v1042 = vand.u32 %v1041, 4294901760
    %1043 = vmatpush1.msra.mxu0 %v1042
    %1044 = vmatprep.subr.mxu0 0.0
    %v1045 = vand.u32 %v856, 4294901760
    %v1046 = vsub.f32 %v856, %v1045
    %v1047 = vand.u32 %v1046, 4294901760
    %v1048 = vsub.f32 %v1046, %v1047
    %v1049 = vand.u32 %v1048, 4294901760
    %1050 = vmatpush1.msra.mxu0 %v1049
    %1051 = vmatprep.subr.mxu0 0.0
    %v1052 = vand.u32 %v855, 4294901760
    %v1053 = vsub.f32 %v855, %v1052
    %v1054 = vand.u32 %v1053, 4294901760
    %v1055 = vsub.f32 %v1053, %v1054
    %v1056 = vand.u32 %v1055, 4294901760
    %1057 = vmatpush1.msra.mxu0 %v1056
    %1058 = vmatprep.subr.mxu0 0.0
    %1059 = vmatpush2.msra.mxu0 0.0
    %1060 = vmatprep.subr.mxu0 0.0
    %1061 = vmatpush2.msra.mxu0 0.0
    %1062 = vmatprep.subr.mxu0 0.0
    %1063 = vmatpush2.msra.mxu0 0.0
    %1064 = vmatprep.subr.mxu0 0.0
    %1065 = vmatpush2.msra.mxu0 0.0
    %1066 = vmatprep.subr.mxu0 0.0
    %1067 = vmatpush2.msra.mxu0 0.0
    %1068 = vmatprep.subr.mxu0 0.0
    %1069 = vmatpush2.msra.mxu0 0.0
    %1070 = vmatprep.subr.mxu0 0.0
    %1071 = vmatpush2.msra.mxu0 0.0
    %1072 = vmatprep.subr.mxu0 0.0
    %1073 = vmatpush2.msra.mxu0 0.0
    %1074 = vmatprep.subr.mxu0 0.0
    %1075 = vmatpush2.msra.mxu0 0.0
    %1076 = vmatprep.subr.mxu0 0.0
    %1077 = vmatpush2.msra.mxu0 0.0
    %1078 = vmatprep.subr.mxu0 0.0
    %1079 = vmatpush2.msra.mxu0 0.0
    %1080 = vmatprep.subr.mxu0 0.0
    %1081 = vmatpush2.msra.mxu0 0.0
    %1082 = vmatprep.subr.mxu0 0.0
    %1083 = vmatpush2.msra.mxu0 0.0
    %1084 = vmatprep.subr.mxu0 0.0
    %1085 = vmatpush2.msra.mxu0 0.0
    %1086 = vmatprep.subr.mxu0 0.0
    %1087 = vmatpush2.msra.mxu0 0.0
    %1088 = vmatprep.subr.mxu0 0.0
    %1089 = vmatpush2.msra.mxu0 0.0
    %1090 = vmatprep.mubr.f32.mxu0 0.0
    %v1091 = vand.u32 %v888, 4294901760
    %1092 = vmatmul.mubr.f32.gmra.mxu0 %v1091
    %v1093 = vpop.f32.mrf.mxu0
    %v1094 = vadd.f32 %v978, %v1093
    %v1095 = vpop.f32.mrf.mxu0
    %1096 = vmatprep.mubr.f32.mxu0 0.0
    %v1097 = vand.u32 %v891, 4294901760
    %1098 = vmatmul.mubr.f32.gmra.mxu0 %v1097
    %v1099 = vpop.f32.mrf.mxu0
    %v1100 = vadd.f32 %v988, %v1099
    %v1101 = vpop.f32.mrf.mxu0
    %1102 = vmatprep.mubr.f32.mxu0 0.0
    %v1103 = vand.u32 %v894, 4294901760
    %1104 = vmatmul.mubr.f32.gmra.mxu0 %v1103
    %v1105 = vpop.f32.mrf.mxu0
    %v1106 = vadd.f32 %v998, %v1105
    %v1107 = vpop.f32.mrf.mxu0
    %1108 = vmatprep.mubr.f32.mxu0 0.0
    %v1109 = vand.u32 %v897, 4294901760
    %1110 = vmatmul.mubr.f32.gmra.mxu0 %v1109
    %v1111 = vpop.f32.mrf.mxu0
    %v1112 = vadd.f32 %v1008, %v1111
    %v1113 = vpop.f32.mrf.mxu0
    %1114 = vdwg.mxu0
    %1115 = vmatprep.subr.mxu0 0.0
    %1116 = vmatpush1.msra.mxu0 0.0
    %1117 = vmatprep.subr.mxu0 0.0
    %1118 = vmatpush1.msra.mxu0 0.0
    %1119 = vmatprep.subr.mxu0 0.0
    %1120 = vmatpush1.msra.mxu0 0.0
    %1121 = vmatprep.subr.mxu0 0.0
    %1122 = vmatpush1.msra.mxu0 0.0
    %1123 = vmatprep.subr.mxu0 0.0
    %1124 = vmatpush1.msra.mxu0 0.0
    %1125 = vmatprep.subr.mxu0 0.0
    %1126 = vmatpush1.msra.mxu0 0.0
    %1127 = vmatprep.subr.mxu0 0.0
    %1128 = vmatpush1.msra.mxu0 0.0
    %1129 = vmatprep.subr.mxu0 0.0
    %1130 = vmatpush1.msra.mxu0 0.0
    %1131 = vmatprep.subr.mxu0 0.0
    %1132 = vmatpush1.msra.mxu0 0.0
    %1133 = vmatprep.subr.mxu0 0.0
    %1134 = vmatpush1.msra.mxu0 0.0
    %1135 = vmatprep.subr.mxu0 0.0
    %1136 = vmatpush1.msra.mxu0 0.0
    %1137 = vmatprep.subr.mxu0 0.0
    %1138 = vmatpush1.msra.mxu0 0.0
    %1139 = vmatprep.subr.mxu0 0.0
    %1140 = vmatpush1.msra.mxu0 0.0
    %1141 = vmatprep.subr.mxu0 0.0
    %v1142 = vand.u32 %v901, 4294901760
    %v1143 = vsub.f32 %v901, %v1142
    %1144 = vmatpush1.msra.mxu0 %v1143
    %1145 = vmatprep.subr.mxu0 0.0
    %v1146 = vand.u32 %v856, 4294901760
    %v1147 = vsub.f32 %v856, %v1146
    %1148 = vmatpush1.msra.mxu0 %v1147
    %1149 = vmatprep.subr.mxu0 0.0
    %v1150 = vand.u32 %v855, 4294901760
    %v1151 = vsub.f32 %v855, %v1150
    %1152 = vmatpush1.msra.mxu0 %v1151
    %1153 = vmatprep.subr.mxu0 0.0
    %1154 = vmatpush2.msra.mxu0 0.0
    %1155 = vmatprep.subr.mxu0 0.0
    %1156 = vmatpush2.msra.mxu0 0.0
    %1157 = vmatprep.subr.mxu0 0.0
    %1158 = vmatpush2.msra.mxu0 0.0
    %1159 = vmatprep.subr.mxu0 0.0
    %1160 = vmatpush2.msra.mxu0 0.0
    %1161 = vmatprep.subr.mxu0 0.0
    %1162 = vmatpush2.msra.mxu0 0.0
    %1163 = vmatprep.subr.mxu0 0.0
    %1164 = vmatpush2.msra.mxu0 0.0
    %1165 = vmatprep.subr.mxu0 0.0
    %1166 = vmatpush2.msra.mxu0 0.0
    %1167 = vmatprep.subr.mxu0 0.0
    %1168 = vmatpush2.msra.mxu0 0.0
    %1169 = vmatprep.subr.mxu0 0.0
    %1170 = vmatpush2.msra.mxu0 0.0
    %1171 = vmatprep.subr.mxu0 0.0
    %1172 = vmatpush2.msra.mxu0 0.0
    %1173 = vmatprep.subr.mxu0 0.0
    %1174 = vmatpush2.msra.mxu0 0.0
    %1175 = vmatprep.subr.mxu0 0.0
    %1176 = vmatpush2.msra.mxu0 0.0
    %1177 = vmatprep.subr.mxu0 0.0
    %1178 = vmatpush2.msra.mxu0 0.0
    %1179 = vmatprep.subr.mxu0 0.0
    %1180 = vmatpush2.msra.mxu0 0.0
    %1181 = vmatprep.subr.mxu0 0.0
    %1182 = vmatpush2.msra.mxu0 0.0
    %1183 = vmatprep.subr.mxu0 0.0
    %1184 = vmatpush2.msra.mxu0 0.0
    %1185 = vmatprep.mubr.f32.mxu0 0.0
    %v1186 = vand.u32 %v888, 4294901760
    %v1187 = vsub.f32 %v888, %v1186
    %1188 = vmatmul.mubr.f32.gmra.mxu0 %v1187
    %v1189 = vpop.f32.mrf.mxu0
    %v1190 = vadd.f32 %v1094, %v1189
    %v1191 = vpop.f32.mrf.mxu0
    %1192 = vmatprep.mubr.f32.mxu0 0.0
    %v1193 = vand.u32 %v891, 4294901760
    %v1194 = vsub.f32 %v891, %v1193
    %1195 = vmatmul.mubr.f32.gmra.mxu0 %v1194
    %v1196 = vpop.f32.mrf.mxu0
    %v1197 = vadd.f32 %v1100, %v1196
    %v1198 = vpop.f32.mrf.mxu0
    %1199 = vmatprep.mubr.f32.mxu0 0.0
    %v1200 = vand.u32 %v894, 4294901760
    %v1201 = vsub.f32 %v894, %v1200
    %1202 = vmatmul.mubr.f32.gmra.mxu0 %v1201
    %v1203 = vpop.f32.mrf.mxu0
    %v1204 = vadd.f32 %v1106, %v1203
    %v1205 = vpop.f32.mrf.mxu0
    %1206 = vmatprep.mubr.f32.mxu0 0.0
    %v1207 = vand.u32 %v897, 4294901760
    %v1208 = vsub.f32 %v897, %v1207
    %1209 = vmatmul.mubr.f32.gmra.mxu0 %v1208
    %v1210 = vpop.f32.mrf.mxu0
    %v1211 = vadd.f32 %v1112, %v1210
    %v1212 = vpop.f32.mrf.mxu0
    %1213 = vdwg.mxu0
    %1214 = vmatprep.subr.mxu0 0.0
    %1215 = vmatpush1.msra.mxu0 0.0
    %1216 = vmatprep.subr.mxu0 0.0
    %1217 = vmatpush1.msra.mxu0 0.0
    %1218 = vmatprep.subr.mxu0 0.0
    %1219 = vmatpush1.msra.mxu0 0.0
    %1220 = vmatprep.subr.mxu0 0.0
    %1221 = vmatpush1.msra.mxu0 0.0
    %1222 = vmatprep.subr.mxu0 0.0
    %1223 = vmatpush1.msra.mxu0 0.0
    %1224 = vmatprep.subr.mxu0 0.0
    %1225 = vmatpush1.msra.mxu0 0.0
    %1226 = vmatprep.subr.mxu0 0.0
    %1227 = vmatpush1.msra.mxu0 0.0
    %1228 = vmatprep.subr.mxu0 0.0
    %1229 = vmatpush1.msra.mxu0 0.0
    %1230 = vmatprep.subr.mxu0 0.0
    %1231 = vmatpush1.msra.mxu0 0.0
    %1232 = vmatprep.subr.mxu0 0.0
    %1233 = vmatpush1.msra.mxu0 0.0
    %1234 = vmatprep.subr.mxu0 0.0
    %1235 = vmatpush1.msra.mxu0 0.0
    %1236 = vmatprep.subr.mxu0 0.0
    %1237 = vmatpush1.msra.mxu0 0.0
    %1238 = vmatprep.subr.mxu0 0.0
    %1239 = vmatpush1.msra.mxu0 0.0
    %1240 = vmatprep.subr.mxu0 0.0
    %v1241 = vand.u32 %v901, 4294901760
    %1242 = vmatpush1.msra.mxu0 %v1241
    %1243 = vmatprep.subr.mxu0 0.0
    %v1244 = vand.u32 %v856, 4294901760
    %1245 = vmatpush1.msra.mxu0 %v1244
    %1246 = vmatprep.subr.mxu0 0.0
    %v1247 = vand.u32 %v855, 4294901760
    %1248 = vmatpush1.msra.mxu0 %v1247
    %1249 = vmatprep.subr.mxu0 0.0
    %1250 = vmatpush2.msra.mxu0 0.0
    %1251 = vmatprep.subr.mxu0 0.0
    %1252 = vmatpush2.msra.mxu0 0.0
    %1253 = vmatprep.subr.mxu0 0.0
    %1254 = vmatpush2.msra.mxu0 0.0
    %1255 = vmatprep.subr.mxu0 0.0
    %1256 = vmatpush2.msra.mxu0 0.0
    %1257 = vmatprep.subr.mxu0 0.0
    %1258 = vmatpush2.msra.mxu0 0.0
    %1259 = vmatprep.subr.mxu0 0.0
    %1260 = vmatpush2.msra.mxu0 0.0
    %1261 = vmatprep.subr.mxu0 0.0
    %1262 = vmatpush2.msra.mxu0 0.0
    %1263 = vmatprep.subr.mxu0 0.0
    %1264 = vmatpush2.msra.mxu0 0.0
    %1265 = vmatprep.subr.mxu0 0.0
    %1266 = vmatpush2.msra.mxu0 0.0
    %1267 = vmatprep.subr.mxu0 0.0
    %1268 = vmatpush2.msra.mxu0 0.0
    %1269 = vmatprep.subr.mxu0 0.0
    %1270 = vmatpush2.msra.mxu0 0.0
    %1271 = vmatprep.subr.mxu0 0.0
    %1272 = vmatpush2.msra.mxu0 0.0
    %1273 = vmatprep.subr.mxu0 0.0
    %1274 = vmatpush2.msra.mxu0 0.0
    %1275 = vmatprep.subr.mxu0 0.0
    %1276 = vmatpush2.msra.mxu0 0.0
    %1277 = vmatprep.subr.mxu0 0.0
    %1278 = vmatpush2.msra.mxu0 0.0
    %1279 = vmatprep.subr.mxu0 0.0
    %1280 = vmatpush2.msra.mxu0 0.0
    %1281 = vmatprep.mubr.f32.mxu0 0.0
    %v1282 = vand.u32 %v888, 4294901760
    %v1283 = vsub.f32 %v888, %v1282
    %v1284 = vand.u32 %v1283, 4294901760
    %1285 = vmatmul.mubr.f32.gmra.mxu0 %v1284
    %v1286 = vpop.f32.mrf.mxu0
    %v1287 = vadd.f32 %v1190, %v1286
    %v1288 = vpop.f32.mrf.mxu0
    %1289 = vmatprep.mubr.f32.mxu0 0.0
    %v1290 = vand.u32 %v891, 4294901760
    %v1291 = vsub.f32 %v891, %v1290
    %v1292 = vand.u32 %v1291, 4294901760
    %1293 = vmatmul.mubr.f32.gmra.mxu0 %v1292
    %v1294 = vpop.f32.mrf.mxu0
    %v1295 = vadd.f32 %v1197, %v1294
    %v1296 = vpop.f32.mrf.mxu0
    %1297 = vmatprep.mubr.f32.mxu0 0.0
    %v1298 = vand.u32 %v894, 4294901760
    %v1299 = vsub.f32 %v894, %v1298
    %v1300 = vand.u32 %v1299, 4294901760
    %1301 = vmatmul.mubr.f32.gmra.mxu0 %v1300
    %v1302 = vpop.f32.mrf.mxu0
    %v1303 = vadd.f32 %v1204, %v1302
    %v1304 = vpop.f32.mrf.mxu0
    %1305 = vmatprep.mubr.f32.mxu0 0.0
    %v1306 = vand.u32 %v897, 4294901760
    %v1307 = vsub.f32 %v897, %v1306
    %v1308 = vand.u32 %v1307, 4294901760
    %1309 = vmatmul.mubr.f32.gmra.mxu0 %v1308
    %v1310 = vpop.f32.mrf.mxu0
    %v1311 = vadd.f32 %v1211, %v1310
    %v1312 = vpop.f32.mrf.mxu0
    %1313 = vdwg.mxu0
    %1314 = vmatprep.subr.mxu0 0.0
    %1315 = vmatpush1.msra.mxu0 0.0
    %1316 = vmatprep.subr.mxu0 0.0
    %1317 = vmatpush1.msra.mxu0 0.0
    %1318 = vmatprep.subr.mxu0 0.0
    %1319 = vmatpush1.msra.mxu0 0.0
    %1320 = vmatprep.subr.mxu0 0.0
    %1321 = vmatpush1.msra.mxu0 0.0
    %1322 = vmatprep.subr.mxu0 0.0
    %1323 = vmatpush1.msra.mxu0 0.0
    %1324 = vmatprep.subr.mxu0 0.0
    %1325 = vmatpush1.msra.mxu0 0.0
    %1326 = vmatprep.subr.mxu0 0.0
    %1327 = vmatpush1.msra.mxu0 0.0
    %1328 = vmatprep.subr.mxu0 0.0
    %1329 = vmatpush1.msra.mxu0 0.0
    %1330 = vmatprep.subr.mxu0 0.0
    %1331 = vmatpush1.msra.mxu0 0.0
    %1332 = vmatprep.subr.mxu0 0.0
    %1333 = vmatpush1.msra.mxu0 0.0
    %1334 = vmatprep.subr.mxu0 0.0
    %1335 = vmatpush1.msra.mxu0 0.0
    %1336 = vmatprep.subr.mxu0 0.0
    %1337 = vmatpush1.msra.mxu0 0.0
    %1338 = vmatprep.subr.mxu0 0.0
    %1339 = vmatpush1.msra.mxu0 0.0
    %1340 = vmatprep.subr.mxu0 0.0
    %v1341 = vand.u32 %v901, 4294901760
    %v1342 = vsub.f32 %v901, %v1341
    %v1343 = vand.u32 %v1342, 4294901760
    %1344 = vmatpush1.msra.mxu0 %v1343
    %1345 = vmatprep.subr.mxu0 0.0
    %v1346 = vand.u32 %v856, 4294901760
    %v1347 = vsub.f32 %v856, %v1346
    %v1348 = vand.u32 %v1347, 4294901760
    %1349 = vmatpush1.msra.mxu0 %v1348
    %1350 = vmatprep.subr.mxu0 0.0
    %v1351 = vand.u32 %v855, 4294901760
    %v1352 = vsub.f32 %v855, %v1351
    %v1353 = vand.u32 %v1352, 4294901760
    %1354 = vmatpush1.msra.mxu0 %v1353
    %1355 = vmatprep.subr.mxu0 0.0
    %1356 = vmatpush2.msra.mxu0 0.0
    %1357 = vmatprep.subr.mxu0 0.0
    %1358 = vmatpush2.msra.mxu0 0.0
    %1359 = vmatprep.subr.mxu0 0.0
    %1360 = vmatpush2.msra.mxu0 0.0
    %1361 = vmatprep.subr.mxu0 0.0
    %1362 = vmatpush2.msra.mxu0 0.0
    %1363 = vmatprep.subr.mxu0 0.0
    %1364 = vmatpush2.msra.mxu0 0.0
    %1365 = vmatprep.subr.mxu0 0.0
    %1366 = vmatpush2.msra.mxu0 0.0
    %1367 = vmatprep.subr.mxu0 0.0
    %1368 = vmatpush2.msra.mxu0 0.0
    %1369 = vmatprep.subr.mxu0 0.0
    %1370 = vmatpush2.msra.mxu0 0.0
    %1371 = vmatprep.subr.mxu0 0.0
    %1372 = vmatpush2.msra.mxu0 0.0
    %1373 = vmatprep.subr.mxu0 0.0
    %1374 = vmatpush2.msra.mxu0 0.0
    %1375 = vmatprep.subr.mxu0 0.0
    %1376 = vmatpush2.msra.mxu0 0.0
    %1377 = vmatprep.subr.mxu0 0.0
    %1378 = vmatpush2.msra.mxu0 0.0
    %1379 = vmatprep.subr.mxu0 0.0
    %1380 = vmatpush2.msra.mxu0 0.0
    %1381 = vmatprep.subr.mxu0 0.0
    %1382 = vmatpush2.msra.mxu0 0.0
    %1383 = vmatprep.subr.mxu0 0.0
    %1384 = vmatpush2.msra.mxu0 0.0
    %1385 = vmatprep.subr.mxu0 0.0
    %1386 = vmatpush2.msra.mxu0 0.0
    %1387 = vmatprep.mubr.f32.mxu0 0.0
    %v1388 = vand.u32 %v888, 4294901760
    %1389 = vmatmul.mubr.f32.gmra.mxu0 %v1388
    %v1390 = vpop.f32.mrf.mxu0
    %v1391 = vadd.f32 %v1287, %v1390
    %v1392 = vpop.f32.mrf.mxu0
    %1393 = vmatprep.mubr.f32.mxu0 0.0
    %v1394 = vand.u32 %v891, 4294901760
    %1395 = vmatmul.mubr.f32.gmra.mxu0 %v1394
    %v1396 = vpop.f32.mrf.mxu0
    %v1397 = vadd.f32 %v1295, %v1396
    %v1398 = vpop.f32.mrf.mxu0
    %1399 = vmatprep.mubr.f32.mxu0 0.0
    %v1400 = vand.u32 %v894, 4294901760
    %1401 = vmatmul.mubr.f32.gmra.mxu0 %v1400
    %v1402 = vpop.f32.mrf.mxu0
    %v1403 = vadd.f32 %v1303, %v1402
    %v1404 = vpop.f32.mrf.mxu0
    %1405 = vmatprep.mubr.f32.mxu0 0.0
    %v1406 = vand.u32 %v897, 4294901760
    %1407 = vmatmul.mubr.f32.gmra.mxu0 %v1406
    %v1408 = vpop.f32.mrf.mxu0
    %v1409 = vadd.f32 %v1311, %v1408
    %v1410 = vpop.f32.mrf.mxu0
    %1411 = vdwg.mxu0
    %1412 = vmatprep.subr.mxu0 0.0
    %1413 = vmatpush1.msra.mxu0 0.0
    %1414 = vmatprep.subr.mxu0 0.0
    %1415 = vmatpush1.msra.mxu0 0.0
    %1416 = vmatprep.subr.mxu0 0.0
    %1417 = vmatpush1.msra.mxu0 0.0
    %1418 = vmatprep.subr.mxu0 0.0
    %1419 = vmatpush1.msra.mxu0 0.0
    %1420 = vmatprep.subr.mxu0 0.0
    %1421 = vmatpush1.msra.mxu0 0.0
    %1422 = vmatprep.subr.mxu0 0.0
    %1423 = vmatpush1.msra.mxu0 0.0
    %1424 = vmatprep.subr.mxu0 0.0
    %1425 = vmatpush1.msra.mxu0 0.0
    %1426 = vmatprep.subr.mxu0 0.0
    %1427 = vmatpush1.msra.mxu0 0.0
    %1428 = vmatprep.subr.mxu0 0.0
    %1429 = vmatpush1.msra.mxu0 0.0
    %1430 = vmatprep.subr.mxu0 0.0
    %1431 = vmatpush1.msra.mxu0 0.0
    %1432 = vmatprep.subr.mxu0 0.0
    %1433 = vmatpush1.msra.mxu0 0.0
    %1434 = vmatprep.subr.mxu0 0.0
    %1435 = vmatpush1.msra.mxu0 0.0
    %1436 = vmatprep.subr.mxu0 0.0
    %1437 = vmatpush1.msra.mxu0 0.0
    %1438 = vmatprep.subr.mxu0 0.0
    %v1439 = vand.u32 %v901, 4294901760
    %1440 = vmatpush1.msra.mxu0 %v1439
    %1441 = vmatprep.subr.mxu0 0.0
    %v1442 = vand.u32 %v856, 4294901760
    %1443 = vmatpush1.msra.mxu0 %v1442
    %1444 = vmatprep.subr.mxu0 0.0
    %v1445 = vand.u32 %v855, 4294901760
    %1446 = vmatpush1.msra.mxu0 %v1445
    %1447 = vmatprep.subr.mxu0 0.0
    %1448 = vmatpush2.msra.mxu0 0.0
    %1449 = vmatprep.subr.mxu0 0.0
    %1450 = vmatpush2.msra.mxu0 0.0
    %1451 = vmatprep.subr.mxu0 0.0
    %1452 = vmatpush2.msra.mxu0 0.0
    %1453 = vmatprep.subr.mxu0 0.0
    %1454 = vmatpush2.msra.mxu0 0.0
    %1455 = vmatprep.subr.mxu0 0.0
    %1456 = vmatpush2.msra.mxu0 0.0
    %1457 = vmatprep.subr.mxu0 0.0
    %1458 = vmatpush2.msra.mxu0 0.0
    %1459 = vmatprep.subr.mxu0 0.0
    %1460 = vmatpush2.msra.mxu0 0.0
    %1461 = vmatprep.subr.mxu0 0.0
    %1462 = vmatpush2.msra.mxu0 0.0
    %1463 = vmatprep.subr.mxu0 0.0
    %1464 = vmatpush2.msra.mxu0 0.0
    %1465 = vmatprep.subr.mxu0 0.0
    %1466 = vmatpush2.msra.mxu0 0.0
    %1467 = vmatprep.subr.mxu0 0.0
    %1468 = vmatpush2.msra.mxu0 0.0
    %1469 = vmatprep.subr.mxu0 0.0
    %1470 = vmatpush2.msra.mxu0 0.0
    %1471 = vmatprep.subr.mxu0 0.0
    %1472 = vmatpush2.msra.mxu0 0.0
    %1473 = vmatprep.subr.mxu0 0.0
    %1474 = vmatpush2.msra.mxu0 0.0
    %1475 = vmatprep.subr.mxu0 0.0
    %1476 = vmatpush2.msra.mxu0 0.0
    %1477 = vmatprep.subr.mxu0 0.0
    %1478 = vmatpush2.msra.mxu0 0.0
    %1479 = vmatprep.mubr.f32.mxu0 0.0
    %v1480 = vand.u32 %v888, 4294901760
    %1481 = vmatmul.mubr.f32.gmra.mxu0 %v1480
    %v1482 = vpop.f32.mrf.mxu0
    %v1483 = vadd.f32 %v1391, %v1482
    %v1484 = vpop.f32.mrf.mxu0
    %1485 = vmatprep.mubr.f32.mxu0 0.0
    %v1486 = vand.u32 %v891, 4294901760
    %1487 = vmatmul.mubr.f32.gmra.mxu0 %v1486
    %v1488 = vpop.f32.mrf.mxu0
    %v1489 = vadd.f32 %v1397, %v1488
    %v1490 = vpop.f32.mrf.mxu0
    %1491 = vmatprep.mubr.f32.mxu0 0.0
    %v1492 = vand.u32 %v894, 4294901760
    %1493 = vmatmul.mubr.f32.gmra.mxu0 %v1492
    %v1494 = vpop.f32.mrf.mxu0
    %v1495 = vadd.f32 %v1403, %v1494
    %v1496 = vpop.f32.mrf.mxu0
    %1497 = vmatprep.mubr.f32.mxu0 0.0
    %v1498 = vand.u32 %v897, 4294901760
    %1499 = vmatmul.mubr.f32.gmra.mxu0 %v1498
    %v1500 = vpop.f32.mrf.mxu0
    %v1501 = vadd.f32 %v1409, %v1500
    %v1502 = vpop.f32.mrf.mxu0
    %1503 = vdwg.mxu0
    %v1504 = vmax.f32 %v1483, 0.0
    %v1505 = vmax.f32 %v1489, 0.0
    %v1506 = vmax.f32 %v1495, 0.0
    %v1507 = vmax.f32 %v1501, 0.0
    %v1508 = vld [vmem:[%s5] sm:$0xff]
    %v1509 = vld [vmem:[%s5 + $0x8] sm:$0x3]
    %v1510 = vld [vmem:[%s6] sm:$0xff]
    %v1511 = vld [vmem:[%s6 + $0x8] sm:$0x3]
    %1513 = vset.pattern.permute.xlu0 0
    %1514 = vperm.xlu0 %1513, %v1510
    %v1515 = vpop.permute.xlu0 %1514
    %1518 = vset.pattern.permute.xlu0 0
    %1519 = vperm.xlu0 %1518, %v1511
    %v1520 = vpop.permute.xlu0 %1519
    %vm1522 = vcmask 244736
    %v1524 = vsel %vm1522, %v1508, 0
    %v1527 = vsel %vm1522, %v1509, 0
    %vm1529 = vcmask 1045504
    %v1531 = vsel %vm1529, %v1507, 0
    %1533 = vmatprep.subr.mxu0 0.0
    %1534 = vmatpush1.msra.mxu0 0.0
    %1535 = vmatprep.subr.mxu0 0.0
    %1536 = vmatpush1.msra.mxu0 0.0
    %1537 = vmatprep.subr.mxu0 0.0
    %1538 = vmatpush1.msra.mxu0 0.0
    %1539 = vmatprep.subr.mxu0 0.0
    %1540 = vmatpush1.msra.mxu0 0.0
    %1541 = vmatprep.subr.mxu0 0.0
    %1542 = vmatpush1.msra.mxu0 0.0
    %1543 = vmatprep.subr.mxu0 0.0
    %1544 = vmatpush1.msra.mxu0 0.0
    %1545 = vmatprep.subr.mxu0 0.0
    %1546 = vmatpush1.msra.mxu0 0.0
    %1547 = vmatprep.subr.mxu0 0.0
    %1548 = vmatpush1.msra.mxu0 0.0
    %1549 = vmatprep.subr.mxu0 0.0
    %1550 = vmatpush1.msra.mxu0 0.0
    %1551 = vmatprep.subr.mxu0 0.0
    %1552 = vmatpush1.msra.mxu0 0.0
    %1553 = vmatprep.subr.mxu0 0.0
    %1554 = vmatpush1.msra.mxu0 0.0
    %1555 = vmatprep.subr.mxu0 0.0
    %1556 = vmatpush1.msra.mxu0 0.0
    %1557 = vmatprep.subr.mxu0 0.0
    %v1558 = vand.u32 %v1531, 4294901760
    %1559 = vmatpush1.msra.mxu0 %v1558
    %1560 = vmatprep.subr.mxu0 0.0
    %v1561 = vand.u32 %v1506, 4294901760
    %1562 = vmatpush1.msra.mxu0 %v1561
    %1563 = vmatprep.subr.mxu0 0.0
    %v1564 = vand.u32 %v1505, 4294901760
    %1565 = vmatpush1.msra.mxu0 %v1564
    %1566 = vmatprep.subr.mxu0 0.0
    %v1567 = vand.u32 %v1504, 4294901760
    %1568 = vmatpush1.msra.mxu0 %v1567
    %1569 = vmatprep.subr.mxu0 0.0
    %1570 = vmatpush2.msra.mxu0 0.0
    %1571 = vmatprep.subr.mxu0 0.0
    %1572 = vmatpush2.msra.mxu0 0.0
    %1573 = vmatprep.subr.mxu0 0.0
    %1574 = vmatpush2.msra.mxu0 0.0
    %1575 = vmatprep.subr.mxu0 0.0
    %1576 = vmatpush2.msra.mxu0 0.0
    %1577 = vmatprep.subr.mxu0 0.0
    %1578 = vmatpush2.msra.mxu0 0.0
    %1579 = vmatprep.subr.mxu0 0.0
    %1580 = vmatpush2.msra.mxu0 0.0
    %1581 = vmatprep.subr.mxu0 0.0
    %1582 = vmatpush2.msra.mxu0 0.0
    %1583 = vmatprep.subr.mxu0 0.0
    %1584 = vmatpush2.msra.mxu0 0.0
    %1585 = vmatprep.subr.mxu0 0.0
    %1586 = vmatpush2.msra.mxu0 0.0
    %1587 = vmatprep.subr.mxu0 0.0
    %1588 = vmatpush2.msra.mxu0 0.0
    %1589 = vmatprep.subr.mxu0 0.0
    %1590 = vmatpush2.msra.mxu0 0.0
    %1591 = vmatprep.subr.mxu0 0.0
    %1592 = vmatpush2.msra.mxu0 0.0
    %1593 = vmatprep.subr.mxu0 0.0
    %1594 = vmatpush2.msra.mxu0 0.0
    %1595 = vmatprep.subr.mxu0 0.0
    %1596 = vmatpush2.msra.mxu0 0.0
    %1597 = vmatprep.subr.mxu0 0.0
    %1598 = vmatpush2.msra.mxu0 0.0
    %1599 = vmatprep.subr.mxu0 0.0
    %1600 = vmatpush2.msra.mxu0 0.0
    %1601 = vmatprep.mubr.f32.mxu0 0.0
    %v1602 = vand.u32 %v1524, 4294901760
    %v1603 = vsub.f32 %v1524, %v1602
    %v1604 = vand.u32 %v1603, 4294901760
    %v1605 = vsub.f32 %v1603, %v1604
    %v1606 = vand.u32 %v1605, 4294901760
    %1607 = vmatmul.mubr.f32.gmra.mxu0 %v1606
    %v1608 = vpop.f32.mrf.mxu0
    %v1609 = vadd.f32 %v1515, %v1608
    %v1610 = vpop.f32.mrf.mxu0
    %1611 = vmatprep.mubr.f32.mxu0 0.0
    %v1612 = vand.u32 %v1527, 4294901760
    %v1613 = vsub.f32 %v1527, %v1612
    %v1614 = vand.u32 %v1613, 4294901760
    %v1615 = vsub.f32 %v1613, %v1614
    %v1616 = vand.u32 %v1615, 4294901760
    %1617 = vmatmul.mubr.f32.gmra.mxu0 %v1616
    %v1618 = vpop.f32.mrf.mxu0
    %v1619 = vadd.f32 %v1520, %v1618
    %v1620 = vpop.f32.mrf.mxu0
    %1621 = vdwg.mxu0
    %1622 = vmatprep.subr.mxu0 0.0
    %1623 = vmatpush1.msra.mxu0 0.0
    %1624 = vmatprep.subr.mxu0 0.0
    %1625 = vmatpush1.msra.mxu0 0.0
    %1626 = vmatprep.subr.mxu0 0.0
    %1627 = vmatpush1.msra.mxu0 0.0
    %1628 = vmatprep.subr.mxu0 0.0
    %1629 = vmatpush1.msra.mxu0 0.0
    %1630 = vmatprep.subr.mxu0 0.0
    %1631 = vmatpush1.msra.mxu0 0.0
    %1632 = vmatprep.subr.mxu0 0.0
    %1633 = vmatpush1.msra.mxu0 0.0
    %1634 = vmatprep.subr.mxu0 0.0
    %1635 = vmatpush1.msra.mxu0 0.0
    %1636 = vmatprep.subr.mxu0 0.0
    %1637 = vmatpush1.msra.mxu0 0.0
    %1638 = vmatprep.subr.mxu0 0.0
    %1639 = vmatpush1.msra.mxu0 0.0
    %1640 = vmatprep.subr.mxu0 0.0
    %1641 = vmatpush1.msra.mxu0 0.0
    %1642 = vmatprep.subr.mxu0 0.0
    %1643 = vmatpush1.msra.mxu0 0.0
    %1644 = vmatprep.subr.mxu0 0.0
    %1645 = vmatpush1.msra.mxu0 0.0
    %1646 = vmatprep.subr.mxu0 0.0
    %v1647 = vand.u32 %v1531, 4294901760
    %v1648 = vsub.f32 %v1531, %v1647
    %v1649 = vand.u32 %v1648, 4294901760
    %v1650 = vsub.f32 %v1648, %v1649
    %v1651 = vand.u32 %v1650, 4294901760
    %1652 = vmatpush1.msra.mxu0 %v1651
    %1653 = vmatprep.subr.mxu0 0.0
    %v1654 = vand.u32 %v1506, 4294901760
    %v1655 = vsub.f32 %v1506, %v1654
    %v1656 = vand.u32 %v1655, 4294901760
    %v1657 = vsub.f32 %v1655, %v1656
    %v1658 = vand.u32 %v1657, 4294901760
    %1659 = vmatpush1.msra.mxu0 %v1658
    %1660 = vmatprep.subr.mxu0 0.0
    %v1661 = vand.u32 %v1505, 4294901760
    %v1662 = vsub.f32 %v1505, %v1661
    %v1663 = vand.u32 %v1662, 4294901760
    %v1664 = vsub.f32 %v1662, %v1663
    %v1665 = vand.u32 %v1664, 4294901760
    %1666 = vmatpush1.msra.mxu0 %v1665
    %1667 = vmatprep.subr.mxu0 0.0
    %v1668 = vand.u32 %v1504, 4294901760
    %v1669 = vsub.f32 %v1504, %v1668
    %v1670 = vand.u32 %v1669, 4294901760
    %v1671 = vsub.f32 %v1669, %v1670
    %v1672 = vand.u32 %v1671, 4294901760
    %1673 = vmatpush1.msra.mxu0 %v1672
    %1674 = vmatprep.subr.mxu0 0.0
    %1675 = vmatpush2.msra.mxu0 0.0
    %1676 = vmatprep.subr.mxu0 0.0
    %1677 = vmatpush2.msra.mxu0 0.0
    %1678 = vmatprep.subr.mxu0 0.0
    %1679 = vmatpush2.msra.mxu0 0.0
    %1680 = vmatprep.subr.mxu0 0.0
    %1681 = vmatpush2.msra.mxu0 0.0
    %1682 = vmatprep.subr.mxu0 0.0
    %1683 = vmatpush2.msra.mxu0 0.0
    %1684 = vmatprep.subr.mxu0 0.0
    %1685 = vmatpush2.msra.mxu0 0.0
    %1686 = vmatprep.subr.mxu0 0.0
    %1687 = vmatpush2.msra.mxu0 0.0
    %1688 = vmatprep.subr.mxu0 0.0
    %1689 = vmatpush2.msra.mxu0 0.0
    %1690 = vmatprep.subr.mxu0 0.0
    %1691 = vmatpush2.msra.mxu0 0.0
    %1692 = vmatprep.subr.mxu0 0.0
    %1693 = vmatpush2.msra.mxu0 0.0
    %1694 = vmatprep.subr.mxu0 0.0
    %1695 = vmatpush2.msra.mxu0 0.0
    %1696 = vmatprep.subr.mxu0 0.0
    %1697 = vmatpush2.msra.mxu0 0.0
    %1698 = vmatprep.subr.mxu0 0.0
    %1699 = vmatpush2.msra.mxu0 0.0
    %1700 = vmatprep.subr.mxu0 0.0
    %1701 = vmatpush2.msra.mxu0 0.0
    %1702 = vmatprep.subr.mxu0 0.0
    %1703 = vmatpush2.msra.mxu0 0.0
    %1704 = vmatprep.subr.mxu0 0.0
    %1705 = vmatpush2.msra.mxu0 0.0
    %1706 = vmatprep.mubr.f32.mxu0 0.0
    %v1707 = vand.u32 %v1524, 4294901760
    %1708 = vmatmul.mubr.f32.gmra.mxu0 %v1707
    %v1709 = vpop.f32.mrf.mxu0
    %v1710 = vadd.f32 %v1609, %v1709
    %v1711 = vpop.f32.mrf.mxu0
    %1712 = vmatprep.mubr.f32.mxu0 0.0
    %v1713 = vand.u32 %v1527, 4294901760
    %1714 = vmatmul.mubr.f32.gmra.mxu0 %v1713
    %v1715 = vpop.f32.mrf.mxu0
    %v1716 = vadd.f32 %v1619, %v1715
    %v1717 = vpop.f32.mrf.mxu0
    %1718 = vdwg.mxu0
    %1719 = vmatprep.subr.mxu0 0.0
    %1720 = vmatpush1.msra.mxu0 0.0
    %1721 = vmatprep.subr.mxu0 0.0
    %1722 = vmatpush1.msra.mxu0 0.0
    %1723 = vmatprep.subr.mxu0 0.0
    %1724 = vmatpush1.msra.mxu0 0.0
    %1725 = vmatprep.subr.mxu0 0.0
    %1726 = vmatpush1.msra.mxu0 0.0
    %1727 = vmatprep.subr.mxu0 0.0
    %1728 = vmatpush1.msra.mxu0 0.0
    %1729 = vmatprep.subr.mxu0 0.0
    %1730 = vmatpush1.msra.mxu0 0.0
    %1731 = vmatprep.subr.mxu0 0.0
    %1732 = vmatpush1.msra.mxu0 0.0
    %1733 = vmatprep.subr.mxu0 0.0
    %1734 = vmatpush1.msra.mxu0 0.0
    %1735 = vmatprep.subr.mxu0 0.0
    %1736 = vmatpush1.msra.mxu0 0.0
    %1737 = vmatprep.subr.mxu0 0.0
    %1738 = vmatpush1.msra.mxu0 0.0
    %1739 = vmatprep.subr.mxu0 0.0
    %1740 = vmatpush1.msra.mxu0 0.0
    %1741 = vmatprep.subr.mxu0 0.0
    %1742 = vmatpush1.msra.mxu0 0.0
    %1743 = vmatprep.subr.mxu0 0.0
    %v1744 = vand.u32 %v1531, 4294901760
    %v1745 = vsub.f32 %v1531, %v1744
    %1746 = vmatpush1.msra.mxu0 %v1745
    %1747 = vmatprep.subr.mxu0 0.0
    %v1748 = vand.u32 %v1506, 4294901760
    %v1749 = vsub.f32 %v1506, %v1748
    %1750 = vmatpush1.msra.mxu0 %v1749
    %1751 = vmatprep.subr.mxu0 0.0
    %v1752 = vand.u32 %v1505, 4294901760
    %v1753 = vsub.f32 %v1505, %v1752
    %1754 = vmatpush1.msra.mxu0 %v1753
    %1755 = vmatprep.subr.mxu0 0.0
    %v1756 = vand.u32 %v1504, 4294901760
    %v1757 = vsub.f32 %v1504, %v1756
    %1758 = vmatpush1.msra.mxu0 %v1757
    %1759 = vmatprep.subr.mxu0 0.0
    %1760 = vmatpush2.msra.mxu0 0.0
    %1761 = vmatprep.subr.mxu0 0.0
    %1762 = vmatpush2.msra.mxu0 0.0
    %1763 = vmatprep.subr.mxu0 0.0
    %1764 = vmatpush2.msra.mxu0 0.0
    %1765 = vmatprep.subr.mxu0 0.0
    %1766 = vmatpush2.msra.mxu0 0.0
    %1767 = vmatprep.subr.mxu0 0.0
    %1768 = vmatpush2.msra.mxu0 0.0
    %1769 = vmatprep.subr.mxu0 0.0
    %1770 = vmatpush2.msra.mxu0 0.0
    %1771 = vmatprep.subr.mxu0 0.0
    %1772 = vmatpush2.msra.mxu0 0.0
    %1773 = vmatprep.subr.mxu0 0.0
    %1774 = vmatpush2.msra.mxu0 0.0
    %1775 = vmatprep.subr.mxu0 0.0
    %1776 = vmatpush2.msra.mxu0 0.0
    %1777 = vmatprep.subr.mxu0 0.0
    %1778 = vmatpush2.msra.mxu0 0.0
    %1779 = vmatprep.subr.mxu0 0.0
    %1780 = vmatpush2.msra.mxu0 0.0
    %1781 = vmatprep.subr.mxu0 0.0
    %1782 = vmatpush2.msra.mxu0 0.0
    %1783 = vmatprep.subr.mxu0 0.0
    %1784 = vmatpush2.msra.mxu0 0.0
    %1785 = vmatprep.subr.mxu0 0.0
    %1786 = vmatpush2.msra.mxu0 0.0
    %1787 = vmatprep.subr.mxu0 0.0
    %1788 = vmatpush2.msra.mxu0 0.0
    %1789 = vmatprep.subr.mxu0 0.0
    %1790 = vmatpush2.msra.mxu0 0.0
    %1791 = vmatprep.mubr.f32.mxu0 0.0
    %v1792 = vand.u32 %v1524, 4294901760
    %v1793 = vsub.f32 %v1524, %v1792
    %1794 = vmatmul.mubr.f32.gmra.mxu0 %v1793
    %v1795 = vpop.f32.mrf.mxu0
    %v1796 = vadd.f32 %v1710, %v1795
    %v1797 = vpop.f32.mrf.mxu0
    %1798 = vmatprep.mubr.f32.mxu0 0.0
    %v1799 = vand.u32 %v1527, 4294901760
    %v1800 = vsub.f32 %v1527, %v1799
    %1801 = vmatmul.mubr.f32.gmra.mxu0 %v1800
    %v1802 = vpop.f32.mrf.mxu0
    %v1803 = vadd.f32 %v1716, %v1802
    %v1804 = vpop.f32.mrf.mxu0
    %1805 = vdwg.mxu0
    %1806 = vmatprep.subr.mxu0 0.0
    %1807 = vmatpush1.msra.mxu0 0.0
    %1808 = vmatprep.subr.mxu0 0.0
    %1809 = vmatpush1.msra.mxu0 0.0
    %1810 = vmatprep.subr.mxu0 0.0
    %1811 = vmatpush1.msra.mxu0 0.0
    %1812 = vmatprep.subr.mxu0 0.0
    %1813 = vmatpush1.msra.mxu0 0.0
    %1814 = vmatprep.subr.mxu0 0.0
    %1815 = vmatpush1.msra.mxu0 0.0
    %1816 = vmatprep.subr.mxu0 0.0
    %1817 = vmatpush1.msra.mxu0 0.0
    %1818 = vmatprep.subr.mxu0 0.0
    %1819 = vmatpush1.msra.mxu0 0.0
    %1820 = vmatprep.subr.mxu0 0.0
    %1821 = vmatpush1.msra.mxu0 0.0
    %1822 = vmatprep.subr.mxu0 0.0
    %1823 = vmatpush1.msra.mxu0 0.0
    %1824 = vmatprep.subr.mxu0 0.0
    %1825 = vmatpush1.msra.mxu0 0.0
    %1826 = vmatprep.subr.mxu0 0.0
    %1827 = vmatpush1.msra.mxu0 0.0
    %1828 = vmatprep.subr.mxu0 0.0
    %1829 = vmatpush1.msra.mxu0 0.0
    %1830 = vmatprep.subr.mxu0 0.0
    %v1831 = vand.u32 %v1531, 4294901760
    %1832 = vmatpush1.msra.mxu0 %v1831
    %1833 = vmatprep.subr.mxu0 0.0
    %v1834 = vand.u32 %v1506, 4294901760
    %1835 = vmatpush1.msra.mxu0 %v1834
    %1836 = vmatprep.subr.mxu0 0.0
    %v1837 = vand.u32 %v1505, 4294901760
    %1838 = vmatpush1.msra.mxu0 %v1837
    %1839 = vmatprep.subr.mxu0 0.0
    %v1840 = vand.u32 %v1504, 4294901760
    %1841 = vmatpush1.msra.mxu0 %v1840
    %1842 = vmatprep.subr.mxu0 0.0
    %1843 = vmatpush2.msra.mxu0 0.0
    %1844 = vmatprep.subr.mxu0 0.0
    %1845 = vmatpush2.msra.mxu0 0.0
    %1846 = vmatprep.subr.mxu0 0.0
    %1847 = vmatpush2.msra.mxu0 0.0
    %1848 = vmatprep.subr.mxu0 0.0
    %1849 = vmatpush2.msra.mxu0 0.0
    %1850 = vmatprep.subr.mxu0 0.0
    %1851 = vmatpush2.msra.mxu0 0.0
    %1852 = vmatprep.subr.mxu0 0.0
    %1853 = vmatpush2.msra.mxu0 0.0
    %1854 = vmatprep.subr.mxu0 0.0
    %1855 = vmatpush2.msra.mxu0 0.0
    %1856 = vmatprep.subr.mxu0 0.0
    %1857 = vmatpush2.msra.mxu0 0.0
    %1858 = vmatprep.subr.mxu0 0.0
    %1859 = vmatpush2.msra.mxu0 0.0
    %1860 = vmatprep.subr.mxu0 0.0
    %1861 = vmatpush2.msra.mxu0 0.0
    %1862 = vmatprep.subr.mxu0 0.0
    %1863 = vmatpush2.msra.mxu0 0.0
    %1864 = vmatprep.subr.mxu0 0.0
    %1865 = vmatpush2.msra.mxu0 0.0
    %1866 = vmatprep.subr.mxu0 0.0
    %1867 = vmatpush2.msra.mxu0 0.0
    %1868 = vmatprep.subr.mxu0 0.0
    %1869 = vmatpush2.msra.mxu0 0.0
    %1870 = vmatprep.subr.mxu0 0.0
    %1871 = vmatpush2.msra.mxu0 0.0
    %1872 = vmatprep.subr.mxu0 0.0
    %1873 = vmatpush2.msra.mxu0 0.0
    %1874 = vmatprep.mubr.f32.mxu0 0.0
    %v1875 = vand.u32 %v1524, 4294901760
    %v1876 = vsub.f32 %v1524, %v1875
    %v1877 = vand.u32 %v1876, 4294901760
    %1878 = vmatmul.mubr.f32.gmra.mxu0 %v1877
    %v1879 = vpop.f32.mrf.mxu0
    %v1880 = vadd.f32 %v1796, %v1879
    %v1881 = vpop.f32.mrf.mxu0
    %1882 = vmatprep.mubr.f32.mxu0 0.0
    %v1883 = vand.u32 %v1527, 4294901760
    %v1884 = vsub.f32 %v1527, %v1883
    %v1885 = vand.u32 %v1884, 4294901760
    %1886 = vmatmul.mubr.f32.gmra.mxu0 %v1885
    %v1887 = vpop.f32.mrf.mxu0
    %v1888 = vadd.f32 %v1803, %v1887
    %v1889 = vpop.f32.mrf.mxu0
    %1890 = vdwg.mxu0
    %1891 = vmatprep.subr.mxu0 0.0
    %1892 = vmatpush1.msra.mxu0 0.0
    %1893 = vmatprep.subr.mxu0 0.0
    %1894 = vmatpush1.msra.mxu0 0.0
    %1895 = vmatprep.subr.mxu0 0.0
    %1896 = vmatpush1.msra.mxu0 0.0
    %1897 = vmatprep.subr.mxu0 0.0
    %1898 = vmatpush1.msra.mxu0 0.0
    %1899 = vmatprep.subr.mxu0 0.0
    %1900 = vmatpush1.msra.mxu0 0.0
    %1901 = vmatprep.subr.mxu0 0.0
    %1902 = vmatpush1.msra.mxu0 0.0
    %1903 = vmatprep.subr.mxu0 0.0
    %1904 = vmatpush1.msra.mxu0 0.0
    %1905 = vmatprep.subr.mxu0 0.0
    %1906 = vmatpush1.msra.mxu0 0.0
    %1907 = vmatprep.subr.mxu0 0.0
    %1908 = vmatpush1.msra.mxu0 0.0
    %1909 = vmatprep.subr.mxu0 0.0
    %1910 = vmatpush1.msra.mxu0 0.0
    %1911 = vmatprep.subr.mxu0 0.0
    %1912 = vmatpush1.msra.mxu0 0.0
    %1913 = vmatprep.subr.mxu0 0.0
    %1914 = vmatpush1.msra.mxu0 0.0
    %1915 = vmatprep.subr.mxu0 0.0
    %v1916 = vand.u32 %v1531, 4294901760
    %v1917 = vsub.f32 %v1531, %v1916
    %v1918 = vand.u32 %v1917, 4294901760
    %1919 = vmatpush1.msra.mxu0 %v1918
    %1920 = vmatprep.subr.mxu0 0.0
    %v1921 = vand.u32 %v1506, 4294901760
    %v1922 = vsub.f32 %v1506, %v1921
    %v1923 = vand.u32 %v1922, 4294901760
    %1924 = vmatpush1.msra.mxu0 %v1923
    %1925 = vmatprep.subr.mxu0 0.0
    %v1926 = vand.u32 %v1505, 4294901760
    %v1927 = vsub.f32 %v1505, %v1926
    %v1928 = vand.u32 %v1927, 4294901760
    %1929 = vmatpush1.msra.mxu0 %v1928
    %1930 = vmatprep.subr.mxu0 0.0
    %v1931 = vand.u32 %v1504, 4294901760
    %v1932 = vsub.f32 %v1504, %v1931
    %v1933 = vand.u32 %v1932, 4294901760
    %1934 = vmatpush1.msra.mxu0 %v1933
    %1935 = vmatprep.subr.mxu0 0.0
    %1936 = vmatpush2.msra.mxu0 0.0
    %1937 = vmatprep.subr.mxu0 0.0
    %1938 = vmatpush2.msra.mxu0 0.0
    %1939 = vmatprep.subr.mxu0 0.0
    %1940 = vmatpush2.msra.mxu0 0.0
    %1941 = vmatprep.subr.mxu0 0.0
    %1942 = vmatpush2.msra.mxu0 0.0
    %1943 = vmatprep.subr.mxu0 0.0
    %1944 = vmatpush2.msra.mxu0 0.0
    %1945 = vmatprep.subr.mxu0 0.0
    %1946 = vmatpush2.msra.mxu0 0.0
    %1947 = vmatprep.subr.mxu0 0.0
    %1948 = vmatpush2.msra.mxu0 0.0
    %1949 = vmatprep.subr.mxu0 0.0
    %1950 = vmatpush2.msra.mxu0 0.0
    %1951 = vmatprep.subr.mxu0 0.0
    %1952 = vmatpush2.msra.mxu0 0.0
    %1953 = vmatprep.subr.mxu0 0.0
    %1954 = vmatpush2.msra.mxu0 0.0
    %1955 = vmatprep.subr.mxu0 0.0
    %1956 = vmatpush2.msra.mxu0 0.0
    %1957 = vmatprep.subr.mxu0 0.0
    %1958 = vmatpush2.msra.mxu0 0.0
    %1959 = vmatprep.subr.mxu0 0.0
    %1960 = vmatpush2.msra.mxu0 0.0
    %1961 = vmatprep.subr.mxu0 0.0
    %1962 = vmatpush2.msra.mxu0 0.0
    %1963 = vmatprep.subr.mxu0 0.0
    %1964 = vmatpush2.msra.mxu0 0.0
    %1965 = vmatprep.subr.mxu0 0.0
    %1966 = vmatpush2.msra.mxu0 0.0
    %1967 = vmatprep.mubr.f32.mxu0 0.0
    %v1968 = vand.u32 %v1524, 4294901760
    %1969 = vmatmul.mubr.f32.gmra.mxu0 %v1968
    %v1970 = vpop.f32.mrf.mxu0
    %v1971 = vadd.f32 %v1880, %v1970
    %v1972 = vpop.f32.mrf.mxu0
    %1973 = vmatprep.mubr.f32.mxu0 0.0
    %v1974 = vand.u32 %v1527, 4294901760
    %1975 = vmatmul.mubr.f32.gmra.mxu0 %v1974
    %v1976 = vpop.f32.mrf.mxu0
    %v1977 = vadd.f32 %v1888, %v1976
    %v1978 = vpop.f32.mrf.mxu0
    %1979 = vdwg.mxu0
    %1980 = vmatprep.subr.mxu0 0.0
    %1981 = vmatpush1.msra.mxu0 0.0
    %1982 = vmatprep.subr.mxu0 0.0
    %1983 = vmatpush1.msra.mxu0 0.0
    %1984 = vmatprep.subr.mxu0 0.0
    %1985 = vmatpush1.msra.mxu0 0.0
    %1986 = vmatprep.subr.mxu0 0.0
    %1987 = vmatpush1.msra.mxu0 0.0
    %1988 = vmatprep.subr.mxu0 0.0
    %1989 = vmatpush1.msra.mxu0 0.0
    %1990 = vmatprep.subr.mxu0 0.0
    %1991 = vmatpush1.msra.mxu0 0.0
    %1992 = vmatprep.subr.mxu0 0.0
    %1993 = vmatpush1.msra.mxu0 0.0
    %1994 = vmatprep.subr.mxu0 0.0
    %1995 = vmatpush1.msra.mxu0 0.0
    %1996 = vmatprep.subr.mxu0 0.0
    %1997 = vmatpush1.msra.mxu0 0.0
    %1998 = vmatprep.subr.mxu0 0.0
    %1999 = vmatpush1.msra.mxu0 0.0
    %2000 = vmatprep.subr.mxu0 0.0
    %2001 = vmatpush1.msra.mxu0 0.0
    %2002 = vmatprep.subr.mxu0 0.0
    %2003 = vmatpush1.msra.mxu0 0.0
    %2004 = vmatprep.subr.mxu0 0.0
    %v2005 = vand.u32 %v1531, 4294901760
    %2006 = vmatpush1.msra.mxu0 %v2005
    %2007 = vmatprep.subr.mxu0 0.0
    %v2008 = vand.u32 %v1506, 4294901760
    %2009 = vmatpush1.msra.mxu0 %v2008
    %2010 = vmatprep.subr.mxu0 0.0
    %v2011 = vand.u32 %v1505, 4294901760
    %2012 = vmatpush1.msra.mxu0 %v2011
    %2013 = vmatprep.subr.mxu0 0.0
    %v2014 = vand.u32 %v1504, 4294901760
    %2015 = vmatpush1.msra.mxu0 %v2014
    %2016 = vmatprep.subr.mxu0 0.0
    %2017 = vmatpush2.msra.mxu0 0.0
    %2018 = vmatprep.subr.mxu0 0.0
    %2019 = vmatpush2.msra.mxu0 0.0
    %2020 = vmatprep.subr.mxu0 0.0
    %2021 = vmatpush2.msra.mxu0 0.0
    %2022 = vmatprep.subr.mxu0 0.0
    %2023 = vmatpush2.msra.mxu0 0.0
    %2024 = vmatprep.subr.mxu0 0.0
    %2025 = vmatpush2.msra.mxu0 0.0
    %2026 = vmatprep.subr.mxu0 0.0
    %2027 = vmatpush2.msra.mxu0 0.0
    %2028 = vmatprep.subr.mxu0 0.0
    %2029 = vmatpush2.msra.mxu0 0.0
    %2030 = vmatprep.subr.mxu0 0.0
    %2031 = vmatpush2.msra.mxu0 0.0
    %2032 = vmatprep.subr.mxu0 0.0
    %2033 = vmatpush2.msra.mxu0 0.0
    %2034 = vmatprep.subr.mxu0 0.0
    %2035 = vmatpush2.msra.mxu0 0.0
    %2036 = vmatprep.subr.mxu0 0.0
    %2037 = vmatpush2.msra.mxu0 0.0
    %2038 = vmatprep.subr.mxu0 0.0
    %2039 = vmatpush2.msra.mxu0 0.0
    %2040 = vmatprep.subr.mxu0 0.0
    %2041 = vmatpush2.msra.mxu0 0.0
    %2042 = vmatprep.subr.mxu0 0.0
    %2043 = vmatpush2.msra.mxu0 0.0
    %2044 = vmatprep.subr.mxu0 0.0
    %2045 = vmatpush2.msra.mxu0 0.0
    %2046 = vmatprep.subr.mxu0 0.0
    %2047 = vmatpush2.msra.mxu0 0.0
    %2048 = vmatprep.mubr.f32.mxu0 0.0
    %v2049 = vand.u32 %v1524, 4294901760
    %2050 = vmatmul.mubr.f32.gmra.mxu0 %v2049
    %v2051 = vpop.f32.mrf.mxu0
    %v2052 = vadd.f32 %v1971, %v2051
    %v2053 = vpop.f32.mrf.mxu0
    %2054 = vmatprep.mubr.f32.mxu0 0.0
    %v2055 = vand.u32 %v1527, 4294901760
    %2056 = vmatmul.mubr.f32.gmra.mxu0 %v2055
    %v2057 = vpop.f32.mrf.mxu0
    %v2058 = vadd.f32 %v1977, %v2057
    %v2059 = vpop.f32.mrf.mxu0
    %2060 = vdwg.mxu0
    %v2061 = vmax.f32 %v2052, 0.0
    %v2062 = vmax.f32 %v2058, 0.0
    %v2063 = vld [vmem:[%s7] sm:$0x3]
    %v2064 = vld [vmem:[%s8] sm:$0x3]
    %2066 = vset.pattern.permute.xlu0 0
    %2067 = vperm.xlu0 %2066, %v2064
    %v2068 = vpop.permute.xlu0 %2067
    %vm2070 = vcmask 80896
    %v2072 = vsel %vm2070, %v2063, 0
    %vm2074 = vcmask 1041408
    %v2076 = vsel %vm2074, %v2062, 0
    %2078 = vmatprep.subr.mxu0 0.0
    %2079 = vmatpush1.msra.mxu0 0.0
    %2080 = vmatprep.subr.mxu0 0.0
    %2081 = vmatpush1.msra.mxu0 0.0
    %2082 = vmatprep.subr.mxu0 0.0
    %2083 = vmatpush1.msra.mxu0 0.0
    %2084 = vmatprep.subr.mxu0 0.0
    %2085 = vmatpush1.msra.mxu0 0.0
    %2086 = vmatprep.subr.mxu0 0.0
    %2087 = vmatpush1.msra.mxu0 0.0
    %2088 = vmatprep.subr.mxu0 0.0
    %2089 = vmatpush1.msra.mxu0 0.0
    %2090 = vmatprep.subr.mxu0 0.0
    %2091 = vmatpush1.msra.mxu0 0.0
    %2092 = vmatprep.subr.mxu0 0.0
    %2093 = vmatpush1.msra.mxu0 0.0
    %2094 = vmatprep.subr.mxu0 0.0
    %2095 = vmatpush1.msra.mxu0 0.0
    %2096 = vmatprep.subr.mxu0 0.0
    %2097 = vmatpush1.msra.mxu0 0.0
    %2098 = vmatprep.subr.mxu0 0.0
    %2099 = vmatpush1.msra.mxu0 0.0
    %2100 = vmatprep.subr.mxu0 0.0
    %2101 = vmatpush1.msra.mxu0 0.0
    %2102 = vmatprep.subr.mxu0 0.0
    %2103 = vmatpush1.msra.mxu0 0.0
    %2104 = vmatprep.subr.mxu0 0.0
    %2105 = vmatpush1.msra.mxu0 0.0
    %2106 = vmatprep.subr.mxu0 0.0
    %v2107 = vand.u32 %v2076, 4294901760
    %2108 = vmatpush1.msra.mxu0 %v2107
    %2109 = vmatprep.subr.mxu0 0.0
    %v2110 = vand.u32 %v2061, 4294901760
    %2111 = vmatpush1.msra.mxu0 %v2110
    %2112 = vmatprep.subr.mxu0 0.0
    %2113 = vmatpush2.msra.mxu0 0.0
    %2114 = vmatprep.subr.mxu0 0.0
    %2115 = vmatpush2.msra.mxu0 0.0
    %2116 = vmatprep.subr.mxu0 0.0
    %2117 = vmatpush2.msra.mxu0 0.0
    %2118 = vmatprep.subr.mxu0 0.0
    %2119 = vmatpush2.msra.mxu0 0.0
    %2120 = vmatprep.subr.mxu0 0.0
    %2121 = vmatpush2.msra.mxu0 0.0
    %2122 = vmatprep.subr.mxu0 0.0
    %2123 = vmatpush2.msra.mxu0 0.0
    %2124 = vmatprep.subr.mxu0 0.0
    %2125 = vmatpush2.msra.mxu0 0.0
    %2126 = vmatprep.subr.mxu0 0.0
    %2127 = vmatpush2.msra.mxu0 0.0
    %2128 = vmatprep.subr.mxu0 0.0
    %2129 = vmatpush2.msra.mxu0 0.0
    %2130 = vmatprep.subr.mxu0 0.0
    %2131 = vmatpush2.msra.mxu0 0.0
    %2132 = vmatprep.subr.mxu0 0.0
    %2133 = vmatpush2.msra.mxu0 0.0
    %2134 = vmatprep.subr.mxu0 0.0
    %2135 = vmatpush2.msra.mxu0 0.0
    %2136 = vmatprep.subr.mxu0 0.0
    %2137 = vmatpush2.msra.mxu0 0.0
    %2138 = vmatprep.subr.mxu0 0.0
    %2139 = vmatpush2.msra.mxu0 0.0
    %2140 = vmatprep.subr.mxu0 0.0
    %2141 = vmatpush2.msra.mxu0 0.0
    %2142 = vmatprep.subr.mxu0 0.0
    %2143 = vmatpush2.msra.mxu0 0.0
    %2144 = vmatprep.mubr.f32.mxu0 0.0
    %v2145 = vand.u32 %v2072, 4294901760
    %v2146 = vsub.f32 %v2072, %v2145
    %v2147 = vand.u32 %v2146, 4294901760
    %v2148 = vsub.f32 %v2146, %v2147
    %v2149 = vand.u32 %v2148, 4294901760
    %2150 = vmatmul.mubr.f32.gmra.mxu0 %v2149
    %v2151 = vpop.f32.mrf.mxu0
    %v2152 = vadd.f32 %v2068, %v2151
    %v2153 = vpop.f32.mrf.mxu0
    %2154 = vdwg.mxu0
    %2155 = vmatprep.subr.mxu0 0.0
    %2156 = vmatpush1.msra.mxu0 0.0
    %2157 = vmatprep.subr.mxu0 0.0
    %2158 = vmatpush1.msra.mxu0 0.0
    %2159 = vmatprep.subr.mxu0 0.0
    %2160 = vmatpush1.msra.mxu0 0.0
    %2161 = vmatprep.subr.mxu0 0.0
    %2162 = vmatpush1.msra.mxu0 0.0
    %2163 = vmatprep.subr.mxu0 0.0
    %2164 = vmatpush1.msra.mxu0 0.0
    %2165 = vmatprep.subr.mxu0 0.0
    %2166 = vmatpush1.msra.mxu0 0.0
    %2167 = vmatprep.subr.mxu0 0.0
    %2168 = vmatpush1.msra.mxu0 0.0
    %2169 = vmatprep.subr.mxu0 0.0
    %2170 = vmatpush1.msra.mxu0 0.0
    %2171 = vmatprep.subr.mxu0 0.0
    %2172 = vmatpush1.msra.mxu0 0.0
    %2173 = vmatprep.subr.mxu0 0.0
    %2174 = vmatpush1.msra.mxu0 0.0
    %2175 = vmatprep.subr.mxu0 0.0
    %2176 = vmatpush1.msra.mxu0 0.0
    %2177 = vmatprep.subr.mxu0 0.0
    %2178 = vmatpush1.msra.mxu0 0.0
    %2179 = vmatprep.subr.mxu0 0.0
    %2180 = vmatpush1.msra.mxu0 0.0
    %2181 = vmatprep.subr.mxu0 0.0
    %2182 = vmatpush1.msra.mxu0 0.0
    %2183 = vmatprep.subr.mxu0 0.0
    %v2184 = vand.u32 %v2076, 4294901760
    %v2185 = vsub.f32 %v2076, %v2184
    %v2186 = vand.u32 %v2185, 4294901760
    %v2187 = vsub.f32 %v2185, %v2186
    %v2188 = vand.u32 %v2187, 4294901760
    %2189 = vmatpush1.msra.mxu0 %v2188
    %2190 = vmatprep.subr.mxu0 0.0
    %v2191 = vand.u32 %v2061, 4294901760
    %v2192 = vsub.f32 %v2061, %v2191
    %v2193 = vand.u32 %v2192, 4294901760
    %v2194 = vsub.f32 %v2192, %v2193
    %v2195 = vand.u32 %v2194, 4294901760
    %2196 = vmatpush1.msra.mxu0 %v2195
    %2197 = vmatprep.subr.mxu0 0.0
    %2198 = vmatpush2.msra.mxu0 0.0
    %2199 = vmatprep.subr.mxu0 0.0
    %2200 = vmatpush2.msra.mxu0 0.0
    %2201 = vmatprep.subr.mxu0 0.0
    %2202 = vmatpush2.msra.mxu0 0.0
    %2203 = vmatprep.subr.mxu0 0.0
    %2204 = vmatpush2.msra.mxu0 0.0
    %2205 = vmatprep.subr.mxu0 0.0
    %2206 = vmatpush2.msra.mxu0 0.0
    %2207 = vmatprep.subr.mxu0 0.0
    %2208 = vmatpush2.msra.mxu0 0.0
    %2209 = vmatprep.subr.mxu0 0.0
    %2210 = vmatpush2.msra.mxu0 0.0
    %2211 = vmatprep.subr.mxu0 0.0
    %2212 = vmatpush2.msra.mxu0 0.0
    %2213 = vmatprep.subr.mxu0 0.0
    %2214 = vmatpush2.msra.mxu0 0.0
    %2215 = vmatprep.subr.mxu0 0.0
    %2216 = vmatpush2.msra.mxu0 0.0
    %2217 = vmatprep.subr.mxu0 0.0
    %2218 = vmatpush2.msra.mxu0 0.0
    %2219 = vmatprep.subr.mxu0 0.0
    %2220 = vmatpush2.msra.mxu0 0.0
    %2221 = vmatprep.subr.mxu0 0.0
    %2222 = vmatpush2.msra.mxu0 0.0
    %2223 = vmatprep.subr.mxu0 0.0
    %2224 = vmatpush2.msra.mxu0 0.0
    %2225 = vmatprep.subr.mxu0 0.0
    %2226 = vmatpush2.msra.mxu0 0.0
    %2227 = vmatprep.subr.mxu0 0.0
    %2228 = vmatpush2.msra.mxu0 0.0
    %2229 = vmatprep.mubr.f32.mxu0 0.0
    %v2230 = vand.u32 %v2072, 4294901760
    %2231 = vmatmul.mubr.f32.gmra.mxu0 %v2230
    %v2232 = vpop.f32.mrf.mxu0
    %v2233 = vadd.f32 %v2152, %v2232
    %v2234 = vpop.f32.mrf.mxu0
    %2235 = vdwg.mxu0
    %2236 = vmatprep.subr.mxu0 0.0
    %2237 = vmatpush1.msra.mxu0 0.0
    %2238 = vmatprep.subr.mxu0 0.0
    %2239 = vmatpush1.msra.mxu0 0.0
    %2240 = vmatprep.subr.mxu0 0.0
    %2241 = vmatpush1.msra.mxu0 0.0
    %2242 = vmatprep.subr.mxu0 0.0
    %2243 = vmatpush1.msra.mxu0 0.0
    %2244 = vmatprep.subr.mxu0 0.0
    %2245 = vmatpush1.msra.mxu0 0.0
    %2246 = vmatprep.subr.mxu0 0.0
    %2247 = vmatpush1.msra.mxu0 0.0
    %2248 = vmatprep.subr.mxu0 0.0
    %2249 = vmatpush1.msra.mxu0 0.0
    %2250 = vmatprep.subr.mxu0 0.0
    %2251 = vmatpush1.msra.mxu0 0.0
    %2252 = vmatprep.subr.mxu0 0.0
    %2253 = vmatpush1.msra.mxu0 0.0
    %2254 = vmatprep.subr.mxu0 0.0
    %2255 = vmatpush1.msra.mxu0 0.0
    %2256 = vmatprep.subr.mxu0 0.0
    %2257 = vmatpush1.msra.mxu0 0.0
    %2258 = vmatprep.subr.mxu0 0.0
    %2259 = vmatpush1.msra.mxu0 0.0
    %2260 = vmatprep.subr.mxu0 0.0
    %2261 = vmatpush1.msra.mxu0 0.0
    %2262 = vmatprep.subr.mxu0 0.0
    %2263 = vmatpush1.msra.mxu0 0.0
    %2264 = vmatprep.subr.mxu0 0.0
    %v2265 = vand.u32 %v2076, 4294901760
    %v2266 = vsub.f32 %v2076, %v2265
    %2267 = vmatpush1.msra.mxu0 %v2266
    %2268 = vmatprep.subr.mxu0 0.0
    %v2269 = vand.u32 %v2061, 4294901760
    %v2270 = vsub.f32 %v2061, %v2269
    %2271 = vmatpush1.msra.mxu0 %v2270
    %2272 = vmatprep.subr.mxu0 0.0
    %2273 = vmatpush2.msra.mxu0 0.0
    %2274 = vmatprep.subr.mxu0 0.0
    %2275 = vmatpush2.msra.mxu0 0.0
    %2276 = vmatprep.subr.mxu0 0.0
    %2277 = vmatpush2.msra.mxu0 0.0
    %2278 = vmatprep.subr.mxu0 0.0
    %2279 = vmatpush2.msra.mxu0 0.0
    %2280 = vmatprep.subr.mxu0 0.0
    %2281 = vmatpush2.msra.mxu0 0.0
    %2282 = vmatprep.subr.mxu0 0.0
    %2283 = vmatpush2.msra.mxu0 0.0
    %2284 = vmatprep.subr.mxu0 0.0
    %2285 = vmatpush2.msra.mxu0 0.0
    %2286 = vmatprep.subr.mxu0 0.0
    %2287 = vmatpush2.msra.mxu0 0.0
    %2288 = vmatprep.subr.mxu0 0.0
    %2289 = vmatpush2.msra.mxu0 0.0
    %2290 = vmatprep.subr.mxu0 0.0
    %2291 = vmatpush2.msra.mxu0 0.0
    %2292 = vmatprep.subr.mxu0 0.0
    %2293 = vmatpush2.msra.mxu0 0.0
    %2294 = vmatprep.subr.mxu0 0.0
    %2295 = vmatpush2.msra.mxu0 0.0
    %2296 = vmatprep.subr.mxu0 0.0
    %2297 = vmatpush2.msra.mxu0 0.0
    %2298 = vmatprep.subr.mxu0 0.0
    %2299 = vmatpush2.msra.mxu0 0.0
    %2300 = vmatprep.subr.mxu0 0.0
    %2301 = vmatpush2.msra.mxu0 0.0
    %2302 = vmatprep.subr.mxu0 0.0
    %2303 = vmatpush2.msra.mxu0 0.0
    %2304 = vmatprep.mubr.f32.mxu0 0.0
    %v2305 = vand.u32 %v2072, 4294901760
    %v2306 = vsub.f32 %v2072, %v2305
    %2307 = vmatmul.mubr.f32.gmra.mxu0 %v2306
    %v2308 = vpop.f32.mrf.mxu0
    %v2309 = vadd.f32 %v2233, %v2308
    %v2310 = vpop.f32.mrf.mxu0
    %2311 = vdwg.mxu0
    %2312 = vmatprep.subr.mxu0 0.0
    %2313 = vmatpush1.msra.mxu0 0.0
    %2314 = vmatprep.subr.mxu0 0.0
    %2315 = vmatpush1.msra.mxu0 0.0
    %2316 = vmatprep.subr.mxu0 0.0
    %2317 = vmatpush1.msra.mxu0 0.0
    %2318 = vmatprep.subr.mxu0 0.0
    %2319 = vmatpush1.msra.mxu0 0.0
    %2320 = vmatprep.subr.mxu0 0.0
    %2321 = vmatpush1.msra.mxu0 0.0
    %2322 = vmatprep.subr.mxu0 0.0
    %2323 = vmatpush1.msra.mxu0 0.0
    %2324 = vmatprep.subr.mxu0 0.0
    %2325 = vmatpush1.msra.mxu0 0.0
    %2326 = vmatprep.subr.mxu0 0.0
    %2327 = vmatpush1.msra.mxu0 0.0
    %2328 = vmatprep.subr.mxu0 0.0
    %2329 = vmatpush1.msra.mxu0 0.0
    %2330 = vmatprep.subr.mxu0 0.0
    %2331 = vmatpush1.msra.mxu0 0.0
    %2332 = vmatprep.subr.mxu0 0.0
    %2333 = vmatpush1.msra.mxu0 0.0
    %2334 = vmatprep.subr.mxu0 0.0
    %2335 = vmatpush1.msra.mxu0 0.0
    %2336 = vmatprep.subr.mxu0 0.0
    %2337 = vmatpush1.msra.mxu0 0.0
    %2338 = vmatprep.subr.mxu0 0.0
    %2339 = vmatpush1.msra.mxu0 0.0
    %2340 = vmatprep.subr.mxu0 0.0
    %v2341 = vand.u32 %v2076, 4294901760
    %2342 = vmatpush1.msra.mxu0 %v2341
    %2343 = vmatprep.subr.mxu0 0.0
    %v2344 = vand.u32 %v2061, 4294901760
    %2345 = vmatpush1.msra.mxu0 %v2344
    %2346 = vmatprep.subr.mxu0 0.0
    %2347 = vmatpush2.msra.mxu0 0.0
    %2348 = vmatprep.subr.mxu0 0.0
    %2349 = vmatpush2.msra.mxu0 0.0
    %2350 = vmatprep.subr.mxu0 0.0
    %2351 = vmatpush2.msra.mxu0 0.0
    %2352 = vmatprep.subr.mxu0 0.0
    %2353 = vmatpush2.msra.mxu0 0.0
    %2354 = vmatprep.subr.mxu0 0.0
    %2355 = vmatpush2.msra.mxu0 0.0
    %2356 = vmatprep.subr.mxu0 0.0
    %2357 = vmatpush2.msra.mxu0 0.0
    %2358 = vmatprep.subr.mxu0 0.0
    %2359 = vmatpush2.msra.mxu0 0.0
    %2360 = vmatprep.subr.mxu0 0.0
    %2361 = vmatpush2.msra.mxu0 0.0
    %2362 = vmatprep.subr.mxu0 0.0
    %2363 = vmatpush2.msra.mxu0 0.0
    %2364 = vmatprep.subr.mxu0 0.0
    %2365 = vmatpush2.msra.mxu0 0.0
    %2366 = vmatprep.subr.mxu0 0.0
    %2367 = vmatpush2.msra.mxu0 0.0
    %2368 = vmatprep.subr.mxu0 0.0
    %2369 = vmatpush2.msra.mxu0 0.0
    %2370 = vmatprep.subr.mxu0 0.0
    %2371 = vmatpush2.msra.mxu0 0.0
    %2372 = vmatprep.subr.mxu0 0.0
    %2373 = vmatpush2.msra.mxu0 0.0
    %2374 = vmatprep.subr.mxu0 0.0
    %2375 = vmatpush2.msra.mxu0 0.0
    %2376 = vmatprep.subr.mxu0 0.0
    %2377 = vmatpush2.msra.mxu0 0.0
    %2378 = vmatprep.mubr.f32.mxu0 0.0
    %v2379 = vand.u32 %v2072, 4294901760
    %v2380 = vsub.f32 %v2072, %v2379
    %v2381 = vand.u32 %v2380, 4294901760
    %2382 = vmatmul.mubr.f32.gmra.mxu0 %v2381
    %v2383 = vpop.f32.mrf.mxu0
    %v2384 = vadd.f32 %v2309, %v2383
    %v2385 = vpop.f32.mrf.mxu0
    %2386 = vdwg.mxu0
    %2387 = vmatprep.subr.mxu0 0.0
    %2388 = vmatpush1.msra.mxu0 0.0
    %2389 = vmatprep.subr.mxu0 0.0
    %2390 = vmatpush1.msra.mxu0 0.0
    %2391 = vmatprep.subr.mxu0 0.0
    %2392 = vmatpush1.msra.mxu0 0.0
    %2393 = vmatprep.subr.mxu0 0.0
    %2394 = vmatpush1.msra.mxu0 0.0
    %2395 = vmatprep.subr.mxu0 0.0
    %2396 = vmatpush1.msra.mxu0 0.0
    %2397 = vmatprep.subr.mxu0 0.0
    %2398 = vmatpush1.msra.mxu0 0.0
    %2399 = vmatprep.subr.mxu0 0.0
    %2400 = vmatpush1.msra.mxu0 0.0
    %2401 = vmatprep.subr.mxu0 0.0
    %2402 = vmatpush1.msra.mxu0 0.0
    %2403 = vmatprep.subr.mxu0 0.0
    %2404 = vmatpush1.msra.mxu0 0.0
    %2405 = vmatprep.subr.mxu0 0.0
    %2406 = vmatpush1.msra.mxu0 0.0
    %2407 = vmatprep.subr.mxu0 0.0
    %2408 = vmatpush1.msra.mxu0 0.0
    %2409 = vmatprep.subr.mxu0 0.0
    %2410 = vmatpush1.msra.mxu0 0.0
    %2411 = vmatprep.subr.mxu0 0.0
    %2412 = vmatpush1.msra.mxu0 0.0
    %2413 = vmatprep.subr.mxu0 0.0
    %2414 = vmatpush1.msra.mxu0 0.0
    %2415 = vmatprep.subr.mxu0 0.0
    %v2416 = vand.u32 %v2076, 4294901760
    %v2417 = vsub.f32 %v2076, %v2416
    %v2418 = vand.u32 %v2417, 4294901760
    %2419 = vmatpush1.msra.mxu0 %v2418
    %2420 = vmatprep.subr.mxu0 0.0
    %v2421 = vand.u32 %v2061, 4294901760
    %v2422 = vsub.f32 %v2061, %v2421
    %v2423 = vand.u32 %v2422, 4294901760
    %2424 = vmatpush1.msra.mxu0 %v2423
    %2425 = vmatprep.subr.mxu0 0.0
    %2426 = vmatpush2.msra.mxu0 0.0
    %2427 = vmatprep.subr.mxu0 0.0
    %2428 = vmatpush2.msra.mxu0 0.0
    %2429 = vmatprep.subr.mxu0 0.0
    %2430 = vmatpush2.msra.mxu0 0.0
    %2431 = vmatprep.subr.mxu0 0.0
    %2432 = vmatpush2.msra.mxu0 0.0
    %2433 = vmatprep.subr.mxu0 0.0
    %2434 = vmatpush2.msra.mxu0 0.0
    %2435 = vmatprep.subr.mxu0 0.0
    %2436 = vmatpush2.msra.mxu0 0.0
    %2437 = vmatprep.subr.mxu0 0.0
    %2438 = vmatpush2.msra.mxu0 0.0
    %2439 = vmatprep.subr.mxu0 0.0
    %2440 = vmatpush2.msra.mxu0 0.0
    %2441 = vmatprep.subr.mxu0 0.0
    %2442 = vmatpush2.msra.mxu0 0.0
    %2443 = vmatprep.subr.mxu0 0.0
    %2444 = vmatpush2.msra.mxu0 0.0
    %2445 = vmatprep.subr.mxu0 0.0
    %2446 = vmatpush2.msra.mxu0 0.0
    %2447 = vmatprep.subr.mxu0 0.0
    %2448 = vmatpush2.msra.mxu0 0.0
    %2449 = vmatprep.subr.mxu0 0.0
    %2450 = vmatpush2.msra.mxu0 0.0
    %2451 = vmatprep.subr.mxu0 0.0
    %2452 = vmatpush2.msra.mxu0 0.0
    %2453 = vmatprep.subr.mxu0 0.0
    %2454 = vmatpush2.msra.mxu0 0.0
    %2455 = vmatprep.subr.mxu0 0.0
    %2456 = vmatpush2.msra.mxu0 0.0
    %2457 = vmatprep.mubr.f32.mxu0 0.0
    %v2458 = vand.u32 %v2072, 4294901760
    %2459 = vmatmul.mubr.f32.gmra.mxu0 %v2458
    %v2460 = vpop.f32.mrf.mxu0
    %v2461 = vadd.f32 %v2384, %v2460
    %v2462 = vpop.f32.mrf.mxu0
    %2463 = vdwg.mxu0
    %2464 = vmatprep.subr.mxu0 0.0
    %2465 = vmatpush1.msra.mxu0 0.0
    %2466 = vmatprep.subr.mxu0 0.0
    %2467 = vmatpush1.msra.mxu0 0.0
    %2468 = vmatprep.subr.mxu0 0.0
    %2469 = vmatpush1.msra.mxu0 0.0
    %2470 = vmatprep.subr.mxu0 0.0
    %2471 = vmatpush1.msra.mxu0 0.0
    %2472 = vmatprep.subr.mxu0 0.0
    %2473 = vmatpush1.msra.mxu0 0.0
    %2474 = vmatprep.subr.mxu0 0.0
    %2475 = vmatpush1.msra.mxu0 0.0
    %2476 = vmatprep.subr.mxu0 0.0
    %2477 = vmatpush1.msra.mxu0 0.0
    %2478 = vmatprep.subr.mxu0 0.0
    %2479 = vmatpush1.msra.mxu0 0.0
    %2480 = vmatprep.subr.mxu0 0.0
    %2481 = vmatpush1.msra.mxu0 0.0
    %2482 = vmatprep.subr.mxu0 0.0
    %2483 = vmatpush1.msra.mxu0 0.0
    %2484 = vmatprep.subr.mxu0 0.0
    %2485 = vmatpush1.msra.mxu0 0.0
    %2486 = vmatprep.subr.mxu0 0.0
    %2487 = vmatpush1.msra.mxu0 0.0
    %2488 = vmatprep.subr.mxu0 0.0
    %2489 = vmatpush1.msra.mxu0 0.0
    %2490 = vmatprep.subr.mxu0 0.0
    %2491 = vmatpush1.msra.mxu0 0.0
    %2492 = vmatprep.subr.mxu0 0.0
    %v2493 = vand.u32 %v2076, 4294901760
    %2494 = vmatpush1.msra.mxu0 %v2493
    %2495 = vmatprep.subr.mxu0 0.0
    %v2496 = vand.u32 %v2061, 4294901760
    %2497 = vmatpush1.msra.mxu0 %v2496
    %2498 = vmatprep.subr.mxu0 0.0
    %2499 = vmatpush2.msra.mxu0 0.0
    %2500 = vmatprep.subr.mxu0 0.0
    %2501 = vmatpush2.msra.mxu0 0.0
    %2502 = vmatprep.subr.mxu0 0.0
    %2503 = vmatpush2.msra.mxu0 0.0
    %2504 = vmatprep.subr.mxu0 0.0
    %2505 = vmatpush2.msra.mxu0 0.0
    %2506 = vmatprep.subr.mxu0 0.0
    %2507 = vmatpush2.msra.mxu0 0.0
    %2508 = vmatprep.subr.mxu0 0.0
    %2509 = vmatpush2.msra.mxu0 0.0
    %2510 = vmatprep.subr.mxu0 0.0
    %2511 = vmatpush2.msra.mxu0 0.0
    %2512 = vmatprep.subr.mxu0 0.0
    %2513 = vmatpush2.msra.mxu0 0.0
    %2514 = vmatprep.subr.mxu0 0.0
    %2515 = vmatpush2.msra.mxu0 0.0
    %2516 = vmatprep.subr.mxu0 0.0
    %2517 = vmatpush2.msra.mxu0 0.0
    %2518 = vmatprep.subr.mxu0 0.0
    %2519 = vmatpush2.msra.mxu0 0.0
    %2520 = vmatprep.subr.mxu0 0.0
    %2521 = vmatpush2.msra.mxu0 0.0
    %2522 = vmatprep.subr.mxu0 0.0
    %2523 = vmatpush2.msra.mxu0 0.0
    %2524 = vmatprep.subr.mxu0 0.0
    %2525 = vmatpush2.msra.mxu0 0.0
    %2526 = vmatprep.subr.mxu0 0.0
    %2527 = vmatpush2.msra.mxu0 0.0
    %2528 = vmatprep.subr.mxu0 0.0
    %2529 = vmatpush2.msra.mxu0 0.0
    %2530 = vmatprep.mubr.f32.mxu0 0.0
    %v2531 = vand.u32 %v2072, 4294901760
    %2532 = vmatmul.mubr.f32.gmra.mxu0 %v2531
    %v2533 = vpop.f32.mrf.mxu0
    %v2534 = vadd.f32 %v2461, %v2533
    %v2535 = vpop.f32.mrf.mxu0
    %2536 = vdwg.mxu0
    %2537 = vst [vmem:[#allocation2] sm:$0x3] %v2534
    // Predicated region
    $region38: #{mlp2_forward.1} parent=1 // pred_check
      _
    $region39: #{mlp2_forward.1} parent=1 // pred_check_branch
      %2539 = sbr.rel (0) target = $region41
    $region40: #{mlp2_forward.1} parent=1 // pred_region
      %s2541 = ssub.s32 32, 32
      %2542 = vsyncadd [#allocation3], %s2541
      %s2544 = sshll.u32 [#allocation2], 4
      %s2545 = int_to_ptr.vmem [resolvable:$true] %s2544
      %2547 = dma.vmem_to_hbm [thread:$0]  %s2545, 32, %s9, [#allocation3]
    $region41: #{mlp2_forward.1} parent=1 // pred_fallthru
      _
    // Predicated region
    $region42: #{mlp2_forward.1} parent=1 // pred_check
      _
    $region43: #{mlp2_forward.1} parent=1 // pred_check_branch
      %2549 = sbr.rel (0) target = $region45
    $region44: #{mlp2_forward.1} parent=1 // pred_region
      %2550 = dma.done [#allocation3], 32
    $region45: #{mlp2_forward.1} parent=1 // pred_fallthru
      _
    %2551 = vsyncpa [#allocation3], 1

</llo_original>
